<compile_context>
chip_gen: v7x
topology: tpu7x:2x2x1
jax: 0.10.0
libtpu: 0.0.40
codegen_flags: <defaults>
</compile_context>

<pallas_src>
import functools

import jax
import jax.numpy as jnp
import numpy as np
from jax.experimental import pallas as pl
from jax.experimental.pallas import tpu as pltpu

EPS = 1e-5  # nn.InstanceNorm2d default (affine=False, biased variance)


def residual_block_kernel(x_ref, w1e_ref, w1c_ref, w2_ref, o_ref, *, Bt, H, W, Cout):
    T = Bt * H
    WCo = W * Cout
    inv_hw = 1.0 / float(H * W)

    x2d_bf = x_ref[...].reshape(T, -1)            # (Bt*H, W*Cin) bf16 (MXU operand)
    x2d = x2d_bf.astype(jnp.float32)              # single upcast, used by the rolls

    # Per-channel selector matrices built in-kernel from iota (no input DMAs,
    # no lane-padded VMEM blocks).
    sel = (jax.lax.broadcasted_iota(jnp.int32, (WCo, Cout), 0) % Cout ==
           jax.lax.broadcasted_iota(jnp.int32, (WCo, Cout), 1)).astype(jnp.float32)
    selT = (jax.lax.broadcasted_iota(jnp.int32, (Cout, WCo), 1) % Cout ==
            jax.lax.broadcasted_iota(jnp.int32, (Cout, WCo), 0)).astype(jnp.float32)

    # Per-row h index: masks the vertical halo and also neutralizes the roll wrap
    # across image boundaries inside the Bt slab (wrap lands on masked rows).
    row_h = jax.lax.broadcasted_iota(jnp.int32, (T, 1), 0) % H
    top = row_h == 0
    bot = row_h == H - 1

    def conv_edge_taps(v_f32, w_m1, w_p1, acc):
        """Add the dy=-1 / dy=+1 vertical-tap contributions of a 3x3 conv.

        Rolls stay in f32 (safe sublane-roll lowering); each rolled tap is cast
        to bf16 right before the MXU.  The dy=0 tap is handled by the caller.
        """
        t_m1 = jnp.where(top, 0.0, pltpu.roll(v_f32, 1, 0)).astype(jnp.bfloat16)
        t_p1 = jnp.where(bot, 0.0, pltpu.roll(v_f32, T - 1, 0)).astype(jnp.bfloat16)
        acc = acc + jnp.dot(t_m1, w_m1, preferred_element_type=jnp.float32)
        acc = acc + jnp.dot(t_p1, w_p1, preferred_element_type=jnp.float32)
        return acc

    def instance_norm(y2d):
        """Per-(sample, channel) norm over H,W; one-pass stats, f32 math.

        The two reduce-selector matmuls (s1/s2) and the two broadcast-selector
        matmuls (scale/shift) are each merged into a single MXU call.
        """
        y3 = y2d.reshape(Bt, H, WCo)
        s = jnp.concatenate([jnp.sum(y3, axis=1), jnp.sum(y3 * y3, axis=1)], axis=0)
        m = jnp.dot(s, sel, preferred_element_type=jnp.float32) * inv_hw  # (2*Bt, Cout)
        m1, m2 = m[:Bt], m[Bt:]
        var = jnp.maximum(m2 - m1 * m1, 0.0)      # clamp: one-pass var can dip < 0
        scale = jax.lax.rsqrt(var + EPS)
        shift = -m1 * scale
        ab = jnp.dot(jnp.concatenate([scale, shift], axis=0), selT,
                     preferred_element_type=jnp.float32)                  # (2*Bt, WCo)
        y3 = y3 * ab[:Bt][:, None, :] + ab[Bt:][:, None, :]
        return y3.reshape(T, WCo)

    # ---- conv1 center tap fused with the 1x1 shortcut conv along N ----
    # (fills the 256-wide MXU N-dim on v6e/v7x; one matmul instead of two)
    fused = jnp.dot(x2d_bf, w1c_ref[...], preferred_element_type=jnp.float32)  # (T, 2*WCo)
    h = conv_edge_taps(x2d, w1e_ref[0], w1e_ref[1], fused[:, :WCo])
    sc = fused[:, WCo:]

    # ---- residual branch: IN -> ReLU -> conv3x3 -> IN ----
    h = jnp.maximum(instance_norm(h), 0.0)
    acc2 = jnp.dot(h.astype(jnp.bfloat16), w2_ref[1],     # hoisted center-tap cast
                   preferred_element_type=jnp.float32)
    out = instance_norm(conv_edge_taps(h, w2_ref[0], w2_ref[2], acc2))

    # ---- shortcut branch: IN ----
    sc = instance_norm(sc)

    # ---- add + final ReLU; (Bt, H, W*Cout) store is fully lane-dense ----
    o_ref[...] = jnp.maximum(out + sc, 0.0).reshape(Bt, H, WCo)


def _band_matrix(W):
    # band[kx, w', w] = 1 iff w' == w + (kx - 1); encodes the 1x3 W-conv with
    # implicit zero padding at the W borders.
    band = np.zeros((3, W, W), np.float32)
    for kx in range(3):
        for w in range(W):
            wp = w + kx - 1
            if 0 <= wp < W:
                band[kx, wp, w] = 1.0
    return band


def build_block_weights(w1_oihw, w2_oihw, ws_oihw, H, W):
    """Build banded MXU weight matrices once (hoisted out of the per-call path).

    Conv biases are omitted on purpose: InstanceNorm(affine=False) subtracts the
    per-channel spatial mean, cancelling them exactly."""
    Cout, Cin = w1_oihw.shape[0], w1_oihw.shape[1]

    wt1 = jnp.transpose(w1_oihw, (2, 3, 1, 0))            # (ky, kx, ci, co)
    wt2 = jnp.transpose(w2_oihw, (2, 3, 1, 0))
    ws = jnp.transpose(ws_oihw[:, :, 0, 0], (1, 0))       # (Cin, Cout)

    band = jnp.asarray(_band_matrix(W))                   # (3, W, W)
    bigw1 = jnp.einsum('xpw,yxio->ypiwo', band, wt1).reshape(3, W * Cin, W * Cout)
    bigw2 = jnp.einsum('xpw,yxio->ypiwo', band, wt2).reshape(3, W * Cout, W * Cout)
    bigws = jnp.einsum('pw,io->piwo', jnp.eye(W, dtype=jnp.float32), ws).reshape(
        W * Cin, W * Cout)

    w1_edges = jnp.stack([bigw1[0], bigw1[2]]).astype(jnp.bfloat16)        # (2, W*Cin, W*Cout)
    w1_center_sc = jnp.concatenate([bigw1[1], bigws], axis=1).astype(jnp.bfloat16)  # (W*Cin, 2*W*Cout)
    w2 = bigw2.astype(jnp.bfloat16)                                        # (3, W*Cout, W*Cout)
    return w1_edges, w1_center_sc, w2


def _pick_bt(N, H, max_rows=256):
    """Images per grid step: as large as the MXU M-dim budget (Bt*H <= max_rows)
    allows, but keep the grid >= 2 steps whenever possible so the "parallel"
    grid axis can shard across the two v7x TensorCores.
    (On v5e, passing max_rows=128 matches its 128-tall MXU.)"""
    cap = max(1, max_rows // H)
    divs = [d for d in range(min(N, cap), 0, -1) if N % d == 0]
    for d in divs:
        if N // d >= 2:
            return d
    return divs[0]


@jax.jit
def residual_block_forward(x_nchw, weights):
    """x_nchw: (N, Cin, H, W) f32; weights from build_block_weights()."""
    w1e, w1c_ws, w2 = weights
    N, Cin, H, W = x_nchw.shape
    Cout = w2.shape[-1] // W

    # NCHW -> lane-dense (N, H, W*Cin), bf16 (halves the HBM->VMEM input DMA;
    # MXU operands are bf16 regardless, so numerics are unchanged).
    x = jnp.transpose(x_nchw, (0, 2, 3, 1)).reshape(N, H, W * Cin).astype(jnp.bfloat16)

    Bt = _pick_bt(N, H)
    kernel = functools.partial(residual_block_kernel, Bt=Bt, H=H, W=W, Cout=Cout)

    out = pl.pallas_call(
        kernel,
        out_shape=jax.ShapeDtypeStruct((N, H, W * Cout), jnp.float32),
        grid=(N // Bt,),
        in_specs=[
            pl.BlockSpec((Bt, H, W * Cin), lambda b: (b, 0, 0)),
            pl.BlockSpec((2, W * Cin, W * Cout), lambda b: (0, 0, 0)),
            pl.BlockSpec((W * Cin, 2 * W * Cout), lambda b: (0, 0)),
            pl.BlockSpec((3, W * Cout, W * Cout), lambda b: (0, 0, 0)),
        ],
        out_specs=pl.BlockSpec((Bt, H, W * Cout), lambda b: (b, 0, 0)),
        compiler_params=pltpu.CompilerParams(
            dimension_semantics=("parallel",)),
    )(x, w1e, w1c_ws, w2)

    out = out.reshape(N, H, W, Cout)
    return jnp.transpose(out, (0, 3, 1, 2))                 # back to NCHW


# ---------------- pure-JAX reference (for a sanity check) ----------------
def _ref_forward(x, w1_t, b1, w2_t, b2, ws_t):
    def conv(v, w, b, pad):
        y = jax.lax.conv_general_dilated(
            v, w, (1, 1), [(pad, pad), (pad, pad)],
            dimension_numbers=("NCHW", "OIHW", "NCHW"))
        if b is not None:
            y = y + b[None, :, None, None]
        return y

    def inorm(v):
        mean = jnp.mean(v, axis=(2, 3), keepdims=True)
        var = jnp.mean(jnp.square(v - mean), axis=(2, 3), keepdims=True)
        return (v - mean) * jax.lax.rsqrt(var + EPS)

    h = jnp.maximum(inorm(conv(x, w1_t, b1, 1)), 0.0)
    out = inorm(conv(h, w2_t, b2, 1))
    sc = inorm(conv(x, ws_t, None, 0))
    return jnp.maximum(out + sc, 0.0)


if __name__ == "__main__":
    N, Cin, Cout, H, W = 2, 4, 8, 16, 16   # inplanes != planes -> shortcut path

    key = jax.random.PRNGKey(0)
    k = jax.random.split(key, 6)
    x = jax.random.normal(k[0], (N, Cin, H, W), jnp.float32)

    # Parameters in PyTorch layout (OIHW). Biases are only used by the reference:
    # the kernel drops them since affine-free InstanceNorm cancels them exactly.
    w1_t = 0.1 * jax.random.normal(k[1], (Cout, Cin, 3, 3), jnp.float32)
    b1_t = 0.1 * jax.random.normal(k[2], (Cout,), jnp.float32)
    w2_t = 0.1 * jax.random.normal(k[3], (Cout, Cout, 3, 3), jnp.float32)
    b2_t = 0.1 * jax.random.normal(k[4], (Cout,), jnp.float32)
    ws_t = 0.1 * jax.random.normal(k[5], (Cout, Cin, 1, 1), jnp.float32)

    weights = build_block_weights(w1_t, w2_t, ws_t, H, W)   # hoisted, reused per call
    y = residual_block_forward(x, weights)
    y = jax.block_until_ready(y)

    y_ref = _ref_forward(x, b1=b1_t, w1_t=w1_t, w2_t=w2_t, b2=b2_t, ws_t=ws_t)
    np.testing.assert_allclose(np.asarray(y), np.asarray(y_ref),
                               atol=5e-2, rtol=5e-2)
    print("KERNEL_OK")
</pallas_src>

<mosaic_0001>
module attributes {stable_mosaic.version = 11 : i64} {
  func.func @residual_block_kernel(%arg0: i32, %arg1: memref<1x16x64xbf16, #tpu.memory_space<vmem>>, %arg2: memref<2x64x128xbf16, #tpu.memory_space<vmem>>, %arg3: memref<64x256xbf16, #tpu.memory_space<vmem>>, %arg4: memref<3x128x128xbf16, #tpu.memory_space<vmem>>, %arg5: memref<1x16x128xf32, #tpu.memory_space<vmem>>) attributes {dimension_semantics = [#tpu.dimension_semantics<parallel>], iteration_bounds = array<i64: 2>, scalar_prefetch = 0 : i64, scratch_operands = 0 : i64, tpu.core_type = #tpu.core_type<tc>, window_params = [{transform_indices = @transform_0, window_bounds = array<i64: 1, 16, 64>}, {pipeline_mode = #tpu.pipeline_mode<synchronous>, transform_indices = @transform_1, window_bounds = array<i64: 2, 64, 128>}, {pipeline_mode = #tpu.pipeline_mode<synchronous>, transform_indices = @transform_2, window_bounds = array<i64: 64, 256>}, {pipeline_mode = #tpu.pipeline_mode<synchronous>, transform_indices = @transform_3, window_bounds = array<i64: 3, 128, 128>}, {transform_indices = @transform_4, window_bounds = array<i64: 1, 16, 128>}]} {
    %c0 = arith.constant 0 : index
    %c0_0 = arith.constant 0 : index
    %c0_1 = arith.constant 0 : index
    %0 = vector.load %arg1[%c0, %c0_0, %c0_1] : memref<1x16x64xbf16, #tpu.memory_space<vmem>>, vector<1x16x64xbf16>
    %1 = vector.shape_cast %0 : vector<1x16x64xbf16> to vector<16x64xbf16>
    %2 = arith.extf %1 : vector<16x64xbf16> to vector<16x64xf32>
    %3 = tpu.iota {dimensions = array<i32: 0>} : vector<128x8xi32>
    %c8_i32 = arith.constant 8 : i32
    %c0_i32 = arith.constant 0 : i32
    %4 = arith.cmpi eq, %c8_i32, %c0_i32 : i32
    %c1_i32 = arith.constant 1 : i32
    %5 = arith.select %4, %c1_i32, %c8_i32 : i32
    %6 = vector.broadcast %5 : i32 to vector<128x8xi32>
    %7 = arith.remsi %3, %6 : vector<128x8xi32>
    %c0_i32_2 = arith.constant 0 : i32
    %8 = vector.broadcast %c0_i32_2 : i32 to vector<128x8xi32>
    %9 = arith.cmpi ne, %7, %8 : vector<128x8xi32>
    %c0_i32_3 = arith.constant 0 : i32
    %10 = vector.broadcast %c0_i32_3 : i32 to vector<128x8xi32>
    %11 = arith.cmpi slt, %7, %10 : vector<128x8xi32>
    %c0_i32_4 = arith.constant 0 : i32
    %12 = arith.cmpi slt, %5, %c0_i32_4 : i32
    %13 = vector.broadcast %12 : i1 to vector<128x8xi1>
    %14 = vector.broadcast %13 : vector<128x8xi1> to vector<128x8xi1>
    %15 = arith.xori %11, %14 : vector<128x8xi1>
    %16 = arith.andi %15, %9 : vector<128x8xi1>
    %17 = vector.broadcast %5 : i32 to vector<128x8xi32>
    %18 = arith.addi %7, %17 : vector<128x8xi32>
    %19 = arith.select %16, %18, %7 : vector<128x8xi1>, vector<128x8xi32>
    %20 = tpu.iota {dimensions = array<i32: 1>} : vector<128x8xi32>
    %21 = arith.cmpi eq, %19, %20 : vector<128x8xi32>
    %22 = arith.extui %21 : vector<128x8xi1> to vector<128x8xi32>
    %23 = arith.sitofp %22 : vector<128x8xi32> to vector<128x8xf32>
    %24 = tpu.iota {dimensions = array<i32: 1>} : vector<8x128xi32>
    %c8_i32_5 = arith.constant 8 : i32
    %c0_i32_6 = arith.constant 0 : i32
    %25 = arith.cmpi eq, %c8_i32_5, %c0_i32_6 : i32
    %c1_i32_7 = arith.constant 1 : i32
    %26 = arith.select %25, %c1_i32_7, %c8_i32_5 : i32
    %27 = vector.broadcast %26 : i32 to vector<8x128xi32>
    %28 = arith.remsi %24, %27 : vector<8x128xi32>
    %c0_i32_8 = arith.constant 0 : i32
    %29 = vector.broadcast %c0_i32_8 : i32 to vector<8x128xi32>
    %30 = arith.cmpi ne, %28, %29 : vector<8x128xi32>
    %c0_i32_9 = arith.constant 0 : i32
    %31 = vector.broadcast %c0_i32_9 : i32 to vector<8x128xi32>
    %32 = arith.cmpi slt, %28, %31 : vector<8x128xi32>
    %c0_i32_10 = arith.constant 0 : i32
    %33 = arith.cmpi slt, %26, %c0_i32_10 : i32
    %34 = vector.broadcast %33 : i1 to vector<8x128xi1>
    %35 = vector.broadcast %34 : vector<8x128xi1> to vector<8x128xi1>
    %36 = arith.xori %32, %35 : vector<8x128xi1>
    %37 = arith.andi %36, %30 : vector<8x128xi1>
    %38 = vector.broadcast %26 : i32 to vector<8x128xi32>
    %39 = arith.addi %28, %38 : vector<8x128xi32>
    %40 = arith.select %37, %39, %28 : vector<8x128xi1>, vector<8x128xi32>
    %41 = tpu.iota {dimensions = array<i32: 0>} : vector<8x128xi32>
    %42 = arith.cmpi eq, %40, %41 : vector<8x128xi32>
    %43 = arith.extui %42 : vector<8x128xi1> to vector<8x128xi32>
    %44 = arith.sitofp %43 : vector<8x128xi32> to vector<8x128xf32>
    %45 = tpu.iota {dimensions = array<i32: 0>} : vector<16x1xi32>
    %c16_i32 = arith.constant 16 : i32
    %c0_i32_11 = arith.constant 0 : i32
    %46 = arith.cmpi eq, %c16_i32, %c0_i32_11 : i32
    %c1_i32_12 = arith.constant 1 : i32
    %47 = arith.select %46, %c1_i32_12, %c16_i32 : i32
    %48 = vector.broadcast %47 : i32 to vector<16x1xi32>
    %49 = arith.remsi %45, %48 : vector<16x1xi32>
    %c0_i32_13 = arith.constant 0 : i32
    %50 = vector.broadcast %c0_i32_13 : i32 to vector<16x1xi32>
    %51 = arith.cmpi ne, %49, %50 : vector<16x1xi32>
    %c0_i32_14 = arith.constant 0 : i32
    %52 = vector.broadcast %c0_i32_14 : i32 to vector<16x1xi32>
    %53 = arith.cmpi slt, %49, %52 : vector<16x1xi32>
    %c0_i32_15 = arith.constant 0 : i32
    %54 = arith.cmpi slt, %47, %c0_i32_15 : i32
    %55 = vector.broadcast %54 : i1 to vector<16x1xi1>
    %56 = vector.broadcast %55 : vector<16x1xi1> to vector<16x1xi1>
    %57 = arith.xori %53, %56 : vector<16x1xi1>
    %58 = arith.andi %57, %51 : vector<16x1xi1>
    %59 = vector.broadcast %47 : i32 to vector<16x1xi32>
    %60 = arith.addi %49, %59 : vector<16x1xi32>
    %61 = arith.select %58, %60, %49 : vector<16x1xi1>, vector<16x1xi32>
    %c0_i32_16 = arith.constant 0 : i32
    %62 = vector.broadcast %c0_i32_16 : i32 to vector<16x1xi32>
    %63 = arith.cmpi eq, %61, %62 : vector<16x1xi32>
    %c15_i32 = arith.constant 15 : i32
    %64 = vector.broadcast %c15_i32 : i32 to vector<16x1xi32>
    %65 = arith.cmpi eq, %61, %64 : vector<16x1xi32>
    %c0_17 = arith.constant 0 : index
    %c0_18 = arith.constant 0 : index
    %66 = vector.load %arg3[%c0_17, %c0_18] : memref<64x256xbf16, #tpu.memory_space<vmem>>, vector<64x256xbf16>
    %cst = arith.constant dense<0.000000e+00> : vector<16x256xf32>
    %67 = tpu.matmul %1, %66, %cst {dimension_numbers = #tpu.dot_dimension_numbers<[1], [0], [0], [1], [0, 0, 1, 1], [], []>} : vector<16x64xbf16>, vector<64x256xbf16>, vector<16x256xf32> -> vector<16x256xf32>
    %c0_19 = arith.constant 0 : index
    %c0_20 = arith.constant 0 : index
    %c0_21 = arith.constant 0 : index
    %68 = vector.load %arg2[%c0_19, %c0_20, %c0_21] : memref<2x64x128xbf16, #tpu.memory_space<vmem>>, vector<1x64x128xbf16>
    %69 = vector.shape_cast %68 : vector<1x64x128xbf16> to vector<64x128xbf16>
    %c1 = arith.constant 1 : index
    %c0_22 = arith.constant 0 : index
    %c0_23 = arith.constant 0 : index
    %70 = vector.load %arg2[%c1, %c0_22, %c0_23] : memref<2x64x128xbf16, #tpu.memory_space<vmem>>, vector<1x64x128xbf16>
    %71 = vector.shape_cast %70 : vector<1x64x128xbf16> to vector<64x128xbf16>
    %72 = vector.extract_strided_slice %67 {offsets = [0, 0], sizes = [16, 128], strides = [1, 1]} : vector<16x256xf32> to vector<16x128xf32>
    %c1_i32_24 = arith.constant 1 : i32
    %73 = tpu.dynamic_rotate %2 by %c1_i32_24 dim 0 : vector<16x64xf32>, i32 -> vector<16x64xf32>
    %cst_25 = arith.constant 0.000000e+00 : f32
    %74 = vector.shape_cast %63 : vector<16x1xi1> to vector<16x1xi1>
    %75 = vector.broadcast %74 : vector<16x1xi1> to vector<16x64xi1>
    %76 = vector.broadcast %cst_25 : f32 to vector<16x64xf32>
    %77 = arith.select %75, %76, %73 : vector<16x64xi1>, vector<16x64xf32>
    %78 = arith.truncf %77 : vector<16x64xf32> to vector<16x64xbf16>
    %c15_i32_26 = arith.constant 15 : i32
    %79 = tpu.dynamic_rotate %2 by %c15_i32_26 dim 0 : vector<16x64xf32>, i32 -> vector<16x64xf32>
    %cst_27 = arith.constant 0.000000e+00 : f32
    %80 = vector.shape_cast %65 : vector<16x1xi1> to vector<16x1xi1>
    %81 = vector.broadcast %80 : vector<16x1xi1> to vector<16x64xi1>
    %82 = vector.broadcast %cst_27 : f32 to vector<16x64xf32>
    %83 = arith.select %81, %82, %79 : vector<16x64xi1>, vector<16x64xf32>
    %84 = arith.truncf %83 : vector<16x64xf32> to vector<16x64xbf16>
    %cst_28 = arith.constant dense<0.000000e+00> : vector<16x128xf32>
    %85 = tpu.matmul %78, %69, %cst_28 {dimension_numbers = #tpu.dot_dimension_numbers<[1], [0], [0], [1], [0, 0, 1, 1], [], []>} : vector<16x64xbf16>, vector<64x128xbf16>, vector<16x128xf32> -> vector<16x128xf32>
    %86 = arith.addf %72, %85 : vector<16x128xf32>
    %cst_29 = arith.constant dense<0.000000e+00> : vector<16x128xf32>
    %87 = tpu.matmul %84, %71, %cst_29 {dimension_numbers = #tpu.dot_dimension_numbers<[1], [0], [0], [1], [0, 0, 1, 1], [], []>} : vector<16x64xbf16>, vector<64x128xbf16>, vector<16x128xf32> -> vector<16x128xf32>
    %88 = arith.addf %86, %87 : vector<16x128xf32>
    %89 = vector.extract_strided_slice %67 {offsets = [0, 128], sizes = [16, 128], strides = [1, 1]} : vector<16x256xf32> to vector<16x128xf32>
    %90 = vector.shape_cast %88 : vector<16x128xf32> to vector<1x16x128xf32>
    %cst_30 = arith.constant dense<0.000000e+00> : vector<1x128xf32>
    %91 = vector.multi_reduction <add>, %90, %cst_30 [1] : vector<1x16x128xf32> to vector<1x128xf32>
    %92 = arith.mulf %90, %90 : vector<1x16x128xf32>
    %cst_31 = arith.constant dense<0.000000e+00> : vector<1x128xf32>
    %93 = vector.multi_reduction <add>, %92, %cst_31 [1] : vector<1x16x128xf32> to vector<1x128xf32>
    %94 = tpu.concatenate %91, %93 in 0 : vector<1x128xf32>, vector<1x128xf32> -> vector<2x128xf32>
    %cst_32 = arith.constant dense<0.000000e+00> : vector<2x8xf32>
    %95 = tpu.matmul %94, %23, %cst_32 {dimension_numbers = #tpu.dot_dimension_numbers<[1], [0], [0], [1], [0, 0, 1, 1], [], []>} : vector<2x128xf32>, vector<128x8xf32>, vector<2x8xf32> -> vector<2x8xf32>
    %cst_33 = arith.constant 3.906250e-03 : f32
    %96 = vector.broadcast %cst_33 : f32 to vector<2x8xf32>
    %97 = arith.mulf %95, %96 : vector<2x8xf32>
    %98 = vector.extract_strided_slice %97 {offsets = [0, 0], sizes = [1, 8], strides = [1, 1]} : vector<2x8xf32> to vector<1x8xf32>
    %99 = vector.extract_strided_slice %97 {offsets = [1, 0], sizes = [1, 8], strides = [1, 1]} : vector<2x8xf32> to vector<1x8xf32>
    %100 = arith.mulf %98, %98 : vector<1x8xf32>
    %101 = arith.subf %99, %100 : vector<1x8xf32>
    %cst_34 = arith.constant 0.000000e+00 : f32
    %102 = vector.broadcast %cst_34 : f32 to vector<1x8xf32>
    %103 = arith.maximumf %101, %102 : vector<1x8xf32>
    %cst_35 = arith.constant 9.99999974E-6 : f32
    %104 = vector.broadcast %cst_35 : f32 to vector<1x8xf32>
    %105 = arith.addf %103, %104 : vector<1x8xf32>
    %106 = math.rsqrt %105 : vector<1x8xf32>
    %cst_36 = arith.constant 0.000000e+00 : f32
    %107 = vector.broadcast %cst_36 : f32 to vector<1x8xf32>
    %108 = arith.subf %107, %98 : vector<1x8xf32>
    %109 = arith.mulf %108, %106 : vector<1x8xf32>
    %110 = tpu.concatenate %106, %109 in 0 : vector<1x8xf32>, vector<1x8xf32> -> vector<2x8xf32>
    %cst_37 = arith.constant dense<0.000000e+00> : vector<2x128xf32>
    %111 = tpu.matmul %110, %44, %cst_37 {dimension_numbers = #tpu.dot_dimension_numbers<[1], [0], [0], [1], [0, 0, 1, 1], [], []>} : vector<2x8xf32>, vector<8x128xf32>, vector<2x128xf32> -> vector<2x128xf32>
    %112 = vector.extract_strided_slice %111 {offsets = [0, 0], sizes = [1, 128], strides = [1, 1]} : vector<2x128xf32> to vector<1x128xf32>
    %113 = vector.shape_cast %112 : vector<1x128xf32> to vector<1x1x128xf32>
    %114 = vector.broadcast %113 : vector<1x1x128xf32> to vector<1x16x128xf32>
    %115 = arith.mulf %90, %114 : vector<1x16x128xf32>
    %116 = vector.extract_strided_slice %111 {offsets = [1, 0], sizes = [1, 128], strides = [1, 1]} : vector<2x128xf32> to vector<1x128xf32>
    %117 = vector.shape_cast %116 : vector<1x128xf32> to vector<1x1x128xf32>
    %118 = vector.broadcast %117 : vector<1x1x128xf32> to vector<1x16x128xf32>
    %119 = arith.addf %115, %118 : vector<1x16x128xf32>
    %120 = vector.shape_cast %119 : vector<1x16x128xf32> to vector<16x128xf32>
    %cst_38 = arith.constant 0.000000e+00 : f32
    %121 = vector.broadcast %cst_38 : f32 to vector<16x128xf32>
    %122 = arith.maximumf %120, %121 : vector<16x128xf32>
    %123 = arith.truncf %122 : vector<16x128xf32> to vector<16x128xbf16>
    %c1_39 = arith.constant 1 : index
    %c0_40 = arith.constant 0 : index
    %c0_41 = arith.constant 0 : index
    %124 = vector.load %arg4[%c1_39, %c0_40, %c0_41] : memref<3x128x128xbf16, #tpu.memory_space<vmem>>, vector<1x128x128xbf16>
    %125 = vector.shape_cast %124 : vector<1x128x128xbf16> to vector<128x128xbf16>
    %cst_42 = arith.constant dense<0.000000e+00> : vector<16x128xf32>
    %126 = tpu.matmul %123, %125, %cst_42 {dimension_numbers = #tpu.dot_dimension_numbers<[1], [0], [0], [1], [0, 0, 1, 1], [], []>} : vector<16x128xbf16>, vector<128x128xbf16>, vector<16x128xf32> -> vector<16x128xf32>
    %c0_43 = arith.constant 0 : index
    %c0_44 = arith.constant 0 : index
    %c0_45 = arith.constant 0 : index
    %127 = vector.load %arg4[%c0_43, %c0_44, %c0_45] : memref<3x128x128xbf16, #tpu.memory_space<vmem>>, vector<1x128x128xbf16>
    %128 = vector.shape_cast %127 : vector<1x128x128xbf16> to vector<128x128xbf16>
    %c2 = arith.constant 2 : index
    %c0_46 = arith.constant 0 : index
    %c0_47 = arith.constant 0 : index
    %129 = vector.load %arg4[%c2, %c0_46, %c0_47] : memref<3x128x128xbf16, #tpu.memory_space<vmem>>, vector<1x128x128xbf16>
    %130 = vector.shape_cast %129 : vector<1x128x128xbf16> to vector<128x128xbf16>
    %c1_i32_48 = arith.constant 1 : i32
    %131 = tpu.dynamic_rotate %122 by %c1_i32_48 dim 0 : vector<16x128xf32>, i32 -> vector<16x128xf32>
    %cst_49 = arith.constant 0.000000e+00 : f32
    %132 = vector.shape_cast %63 : vector<16x1xi1> to vector<16x1xi1>
    %133 = vector.broadcast %132 : vector<16x1xi1> to vector<16x128xi1>
    %134 = vector.broadcast %cst_49 : f32 to vector<16x128xf32>
    %135 = arith.select %133, %134, %131 : vector<16x128xi1>, vector<16x128xf32>
    %136 = arith.truncf %135 : vector<16x128xf32> to vector<16x128xbf16>
    %c15_i32_50 = arith.constant 15 : i32
    %137 = tpu.dynamic_rotate %122 by %c15_i32_50 dim 0 : vector<16x128xf32>, i32 -> vector<16x128xf32>
    %cst_51 = arith.constant 0.000000e+00 : f32
    %138 = vector.shape_cast %65 : vector<16x1xi1> to vector<16x1xi1>
    %139 = vector.broadcast %138 : vector<16x1xi1> to vector<16x128xi1>
    %140 = vector.broadcast %cst_51 : f32 to vector<16x128xf32>
    %141 = arith.select %139, %140, %137 : vector<16x128xi1>, vector<16x128xf32>
    %142 = arith.truncf %141 : vector<16x128xf32> to vector<16x128xbf16>
    %cst_52 = arith.constant dense<0.000000e+00> : vector<16x128xf32>
    %143 = tpu.matmul %136, %128, %cst_52 {dimension_numbers = #tpu.dot_dimension_numbers<[1], [0], [0], [1], [0, 0, 1, 1], [], []>} : vector<16x128xbf16>, vector<128x128xbf16>, vector<16x128xf32> -> vector<16x128xf32>
    %144 = arith.addf %126, %143 : vector<16x128xf32>
    %cst_53 = arith.constant dense<0.000000e+00> : vector<16x128xf32>
    %145 = tpu.matmul %142, %130, %cst_53 {dimension_numbers = #tpu.dot_dimension_numbers<[1], [0], [0], [1], [0, 0, 1, 1], [], []>} : vector<16x128xbf16>, vector<128x128xbf16>, vector<16x128xf32> -> vector<16x128xf32>
    %146 = arith.addf %144, %145 : vector<16x128xf32>
    %147 = vector.shape_cast %146 : vector<16x128xf32> to vector<1x16x128xf32>
    %cst_54 = arith.constant dense<0.000000e+00> : vector<1x128xf32>
    %148 = vector.multi_reduction <add>, %147, %cst_54 [1] : vector<1x16x128xf32> to vector<1x128xf32>
    %149 = arith.mulf %147, %147 : vector<1x16x128xf32>
    %cst_55 = arith.constant dense<0.000000e+00> : vector<1x128xf32>
    %150 = vector.multi_reduction <add>, %149, %cst_55 [1] : vector<1x16x128xf32> to vector<1x128xf32>
    %151 = tpu.concatenate %148, %150 in 0 : vector<1x128xf32>, vector<1x128xf32> -> vector<2x128xf32>
    %cst_56 = arith.constant dense<0.000000e+00> : vector<2x8xf32>
    %152 = tpu.matmul %151, %23, %cst_56 {dimension_numbers = #tpu.dot_dimension_numbers<[1], [0], [0], [1], [0, 0, 1, 1], [], []>} : vector<2x128xf32>, vector<128x8xf32>, vector<2x8xf32> -> vector<2x8xf32>
    %cst_57 = arith.constant 3.906250e-03 : f32
    %153 = vector.broadcast %cst_57 : f32 to vector<2x8xf32>
    %154 = arith.mulf %152, %153 : vector<2x8xf32>
    %155 = vector.extract_strided_slice %154 {offsets = [0, 0], sizes = [1, 8], strides = [1, 1]} : vector<2x8xf32> to vector<1x8xf32>
    %156 = vector.extract_strided_slice %154 {offsets = [1, 0], sizes = [1, 8], strides = [1, 1]} : vector<2x8xf32> to vector<1x8xf32>
    %157 = arith.mulf %155, %155 : vector<1x8xf32>
    %158 = arith.subf %156, %157 : vector<1x8xf32>
    %cst_58 = arith.constant 0.000000e+00 : f32
    %159 = vector.broadcast %cst_58 : f32 to vector<1x8xf32>
    %160 = arith.maximumf %158, %159 : vector<1x8xf32>
    %cst_59 = arith.constant 9.99999974E-6 : f32
    %161 = vector.broadcast %cst_59 : f32 to vector<1x8xf32>
    %162 = arith.addf %160, %161 : vector<1x8xf32>
    %163 = math.rsqrt %162 : vector<1x8xf32>
    %cst_60 = arith.constant 0.000000e+00 : f32
    %164 = vector.broadcast %cst_60 : f32 to vector<1x8xf32>
    %165 = arith.subf %164, %155 : vector<1x8xf32>
    %166 = arith.mulf %165, %163 : vector<1x8xf32>
    %167 = tpu.concatenate %163, %166 in 0 : vector<1x8xf32>, vector<1x8xf32> -> vector<2x8xf32>
    %cst_61 = arith.constant dense<0.000000e+00> : vector<2x128xf32>
    %168 = tpu.matmul %167, %44, %cst_61 {dimension_numbers = #tpu.dot_dimension_numbers<[1], [0], [0], [1], [0, 0, 1, 1], [], []>} : vector<2x8xf32>, vector<8x128xf32>, vector<2x128xf32> -> vector<2x128xf32>
    %169 = vector.extract_strided_slice %168 {offsets = [0, 0], sizes = [1, 128], strides = [1, 1]} : vector<2x128xf32> to vector<1x128xf32>
    %170 = vector.shape_cast %169 : vector<1x128xf32> to vector<1x1x128xf32>
    %171 = vector.broadcast %170 : vector<1x1x128xf32> to vector<1x16x128xf32>
    %172 = arith.mulf %147, %171 : vector<1x16x128xf32>
    %173 = vector.extract_strided_slice %168 {offsets = [1, 0], sizes = [1, 128], strides = [1, 1]} : vector<2x128xf32> to vector<1x128xf32>
    %174 = vector.shape_cast %173 : vector<1x128xf32> to vector<1x1x128xf32>
    %175 = vector.broadcast %174 : vector<1x1x128xf32> to vector<1x16x128xf32>
    %176 = arith.addf %172, %175 : vector<1x16x128xf32>
    %177 = vector.shape_cast %176 : vector<1x16x128xf32> to vector<16x128xf32>
    %178 = vector.shape_cast %89 : vector<16x128xf32> to vector<1x16x128xf32>
    %cst_62 = arith.constant dense<0.000000e+00> : vector<1x128xf32>
    %179 = vector.multi_reduction <add>, %178, %cst_62 [1] : vector<1x16x128xf32> to vector<1x128xf32>
    %180 = arith.mulf %178, %178 : vector<1x16x128xf32>
    %cst_63 = arith.constant dense<0.000000e+00> : vector<1x128xf32>
    %181 = vector.multi_reduction <add>, %180, %cst_63 [1] : vector<1x16x128xf32> to vector<1x128xf32>
    %182 = tpu.concatenate %179, %181 in 0 : vector<1x128xf32>, vector<1x128xf32> -> vector<2x128xf32>
    %cst_64 = arith.constant dense<0.000000e+00> : vector<2x8xf32>
    %183 = tpu.matmul %182, %23, %cst_64 {dimension_numbers = #tpu.dot_dimension_numbers<[1], [0], [0], [1], [0, 0, 1, 1], [], []>} : vector<2x128xf32>, vector<128x8xf32>, vector<2x8xf32> -> vector<2x8xf32>
    %cst_65 = arith.constant 3.906250e-03 : f32
    %184 = vector.broadcast %cst_65 : f32 to vector<2x8xf32>
    %185 = arith.mulf %183, %184 : vector<2x8xf32>
    %186 = vector.extract_strided_slice %185 {offsets = [0, 0], sizes = [1, 8], strides = [1, 1]} : vector<2x8xf32> to vector<1x8xf32>
    %187 = vector.extract_strided_slice %185 {offsets = [1, 0], sizes = [1, 8], strides = [1, 1]} : vector<2x8xf32> to vector<1x8xf32>
    %188 = arith.mulf %186, %186 : vector<1x8xf32>
    %189 = arith.subf %187, %188 : vector<1x8xf32>
    %cst_66 = arith.constant 0.000000e+00 : f32
    %190 = vector.broadcast %cst_66 : f32 to vector<1x8xf32>
    %191 = arith.maximumf %189, %190 : vector<1x8xf32>
    %cst_67 = arith.constant 9.99999974E-6 : f32
    %192 = vector.broadcast %cst_67 : f32 to vector<1x8xf32>
    %193 = arith.addf %191, %192 : vector<1x8xf32>
    %194 = math.rsqrt %193 : vector<1x8xf32>
    %cst_68 = arith.constant 0.000000e+00 : f32
    %195 = vector.broadcast %cst_68 : f32 to vector<1x8xf32>
    %196 = arith.subf %195, %186 : vector<1x8xf32>
    %197 = arith.mulf %196, %194 : vector<1x8xf32>
    %198 = tpu.concatenate %194, %197 in 0 : vector<1x8xf32>, vector<1x8xf32> -> vector<2x8xf32>
    %cst_69 = arith.constant dense<0.000000e+00> : vector<2x128xf32>
    %199 = tpu.matmul %198, %44, %cst_69 {dimension_numbers = #tpu.dot_dimension_numbers<[1], [0], [0], [1], [0, 0, 1, 1], [], []>} : vector<2x8xf32>, vector<8x128xf32>, vector<2x128xf32> -> vector<2x128xf32>
    %200 = vector.extract_strided_slice %199 {offsets = [0, 0], sizes = [1, 128], strides = [1, 1]} : vector<2x128xf32> to vector<1x128xf32>
    %201 = vector.shape_cast %200 : vector<1x128xf32> to vector<1x1x128xf32>
    %202 = vector.broadcast %201 : vector<1x1x128xf32> to vector<1x16x128xf32>
    %203 = arith.mulf %178, %202 : vector<1x16x128xf32>
    %204 = vector.extract_strided_slice %199 {offsets = [1, 0], sizes = [1, 128], strides = [1, 1]} : vector<2x128xf32> to vector<1x128xf32>
    %205 = vector.shape_cast %204 : vector<1x128xf32> to vector<1x1x128xf32>
    %206 = vector.broadcast %205 : vector<1x1x128xf32> to vector<1x16x128xf32>
    %207 = arith.addf %203, %206 : vector<1x16x128xf32>
    %208 = vector.shape_cast %207 : vector<1x16x128xf32> to vector<16x128xf32>
    %209 = arith.addf %177, %208 : vector<16x128xf32>
    %cst_70 = arith.constant 0.000000e+00 : f32
    %210 = vector.broadcast %cst_70 : f32 to vector<16x128xf32>
    %211 = arith.maximumf %209, %210 : vector<16x128xf32>
    %212 = vector.shape_cast %211 : vector<16x128xf32> to vector<1x16x128xf32>
    %c0_71 = arith.constant 0 : index
    %c0_72 = arith.constant 0 : index
    %c0_73 = arith.constant 0 : index
    %213 = vector.load %arg5[%c0_71, %c0_72, %c0_73] : memref<1x16x128xf32, #tpu.memory_space<vmem>>, vector<1x16x128xf32>
    tpu.vector_store %arg5[%c0_71, %c0_72, %c0_73], %212 {strides = array<i32>} : memref<1x16x128xf32, #tpu.memory_space<vmem>>, vector<1x16x128xf32>,
    return
  }
  func.func @transform_0(%arg0: i32) -> (i32, i32, i32) {
    %c0_i32 = arith.constant 0 : i32
    %c0_i32_0 = arith.constant 0 : i32
    %c0_i32_1 = arith.constant 0 : i32
    return %arg0, %c0_i32, %c0_i32_0 : i32, i32, i32
  }
  func.func @transform_1(%arg0: i32) -> (i32, i32, i32) {
    %c0_i32 = arith.constant 0 : i32
    %c0_i32_0 = arith.constant 0 : i32
    %c0_i32_1 = arith.constant 0 : i32
    %c0_i32_2 = arith.constant 0 : i32
    return %c0_i32, %c0_i32_0, %c0_i32_1 : i32, i32, i32
  }
  func.func @transform_2(%arg0: i32) -> (i32, i32) {
    %c0_i32 = arith.constant 0 : i32
    %c0_i32_0 = arith.constant 0 : i32
    %c0_i32_1 = arith.constant 0 : i32
    return %c0_i32, %c0_i32_0 : i32, i32
  }
  func.func @transform_3(%arg0: i32) -> (i32, i32, i32) {
    %c0_i32 = arith.constant 0 : i32
    %c0_i32_0 = arith.constant 0 : i32
    %c0_i32_1 = arith.constant 0 : i32
    %c0_i32_2 = arith.constant 0 : i32
    return %c0_i32, %c0_i32_0, %c0_i32_1 : i32, i32, i32
  }
  func.func @transform_4(%arg0: i32) -> (i32, i32, i32) {
    %c0_i32 = arith.constant 0 : i32
    %c0_i32_0 = arith.constant 0 : i32
    %c0_i32_1 = arith.constant 0 : i32
    return %arg0, %c0_i32, %c0_i32_0 : i32, i32, i32
  }
}

</mosaic_0001>

<llo_original>
// kernel: residual_block_forward.1
$region0: #{residual_block_forward.1}
  #allocation0 [shape = 'u32[]', space=smem, size = 0x4, offset = 0x4, fixed_abs, tag = 'smem constant byte address 0x4 - core index']
  #allocation1 [shape = 'u32[144,128]{1,0:T(1,128)}', space=vmem, size = 0x12000, scoped, tag = 'internal scratch']
  %s0 = inlined_call_operand.vmem [shape: bf16[2,16,64], index: 0, kind: input, shape index: {}]
  %s1 = inlined_call_operand.vmem [shape: bf16[2,64,128], index: 1, kind: input, shape index: {}]
  %s2 = inlined_call_operand.vmem [shape: bf16[64,256], index: 2, kind: input, shape index: {}]
  %s3 = inlined_call_operand.vmem [shape: bf16[3,128,128], index: 3, kind: input, shape index: {}]
  %s4 = inlined_call_operand.vmem [shape: f32[2,16,128], index: 4, kind: output, shape index: {}]
  %s5 = sld [smem:[#allocation0]]
  $region49: #{residual_block_forward.1} parent=0
    _
  %s7 = ssub.s32 1, %s5
  %s8 = scalar_select 0, %s7, %s5
  loop: start=0, step=1, limit=4
  $region2: #{residual_block_forward.1} parent=0 // loop_pre_header
    _
  $region3: #{residual_block_forward.1} parent=0 // loop_header
    %s10 = sphi 0, %s14
    %p11 = scmp.ge.s32.totalorder %s10, 4
    %s20 = sphi 0, %s22
    %s23 = sphi 0, %s20
    %s24 = sphi 0, %s23
    %s40 = sphi 0, %s24
    %s44 = sphi 0, %s44
    %s46 = sphi 0, %s44
    %s47 = sphi 0, %s46
    %s61 = sphi 0, %s47
    %s65 = sphi 0, %s65
    %s67 = sphi 0, %s65
    %s68 = sphi 0, %s67
    %s82 = sphi 0, %s68
    %s86 = sphi 0, %s86
    %s88 = sphi 0, %s86
    %s89 = sphi 0, %s88
    %s103 = sphi 0, %s89
    %s109 = sphi 0, %s111
    %s112 = sphi 0, %s109
    %s113 = sphi 0, %s112
    %s129 = sphi 0, %s113
  $region4: #{residual_block_forward.1} parent=0 // loop_header_branch
    %13 = sbr.rel (%p11) target = $region8
  $region5: #{residual_block_forward.1} parent=0 // loop_body
    %s15 = ssub.s32 %s10, 1
    %s16 = ssub.s32 %s10, 2
    %s17 = sadd.s32 %s10, 1
    %s18 = ssub.s32 %s10, %s17
    %p19 = scmp.eq.s32.totalorder %s18, 0
    %s21 = sadd.s32 %s20, 1
    %s22 = scalar_select %p19, %s20, %s21
    %p25 = pneg %p19
    %p26 = scmp.eq.s32.totalorder %s10, 1
    %p27 = por %p25, %p26
    %p28 = scmp.ne.s32.totalorder %s20, %s23
    %p29 = scmp.eq.s32.totalorder %s10, 0
    %p30 = por %p28, %p29
    %p31 = scmp.ne.s32.totalorder %s20, %s23
    %p32 = scmp.eq.s32.totalorder %s15, 1
    %p33 = por %p31, %p32
    %p34 = scmp.ne.s32.totalorder %s23, %s24
    %p35 = scmp.eq.s32.totalorder %s15, 0
    %p36 = por %p34, %p35
    %p37 = scmp.ne.s32.totalorder %s23, %s24
    %p38 = scmp.eq.s32.totalorder %s16, 1
    %p39 = por %p37, %p38
    %p41 = scmp.ne.s32.totalorder %s24, %s40
    %p42 = scmp.eq.s32.totalorder %s16, 0
    %p43 = por %p41, %p42
    %s45 = sadd.s32 %s44, 1
    %p48 = scmp.eq.s32.totalorder %s10, 1
    %p49 = scmp.ne.s32.totalorder %s44, %s46
    %p50 = scmp.eq.s32.totalorder %s10, 0
    %p51 = por %p49, %p50
    %p52 = scmp.ne.s32.totalorder %s44, %s46
    %p53 = scmp.eq.s32.totalorder %s15, 1
    %p54 = por %p52, %p53
    %p55 = scmp.ne.s32.totalorder %s46, %s47
    %p56 = scmp.eq.s32.totalorder %s15, 0
    %p57 = por %p55, %p56
    %p58 = scmp.ne.s32.totalorder %s46, %s47
    %p59 = scmp.eq.s32.totalorder %s16, 1
    %p60 = por %p58, %p59
    %p62 = scmp.ne.s32.totalorder %s47, %s61
    %p63 = scmp.eq.s32.totalorder %s16, 0
    %p64 = por %p62, %p63
    %s66 = sadd.s32 %s65, 1
    %p69 = scmp.eq.s32.totalorder %s10, 1
    %p70 = scmp.ne.s32.totalorder %s65, %s67
    %p71 = scmp.eq.s32.totalorder %s10, 0
    %p72 = por %p70, %p71
    %p73 = scmp.ne.s32.totalorder %s65, %s67
    %p74 = scmp.eq.s32.totalorder %s15, 1
    %p75 = por %p73, %p74
    %p76 = scmp.ne.s32.totalorder %s67, %s68
    %p77 = scmp.eq.s32.totalorder %s15, 0
    %p78 = por %p76, %p77
    %p79 = scmp.ne.s32.totalorder %s67, %s68
    %p80 = scmp.eq.s32.totalorder %s16, 1
    %p81 = por %p79, %p80
    %p83 = scmp.ne.s32.totalorder %s68, %s82
    %p84 = scmp.eq.s32.totalorder %s16, 0
    %p85 = por %p83, %p84
    %s87 = sadd.s32 %s86, 1
    %p90 = scmp.eq.s32.totalorder %s10, 1
    %p91 = scmp.ne.s32.totalorder %s86, %s88
    %p92 = scmp.eq.s32.totalorder %s10, 0
    %p93 = por %p91, %p92
    %p94 = scmp.ne.s32.totalorder %s86, %s88
    %p95 = scmp.eq.s32.totalorder %s15, 1
    %p96 = por %p94, %p95
    %p97 = scmp.ne.s32.totalorder %s88, %s89
    %p98 = scmp.eq.s32.totalorder %s15, 0
    %p99 = por %p97, %p98
    %p100 = scmp.ne.s32.totalorder %s88, %s89
    %p101 = scmp.eq.s32.totalorder %s16, 1
    %p102 = por %p100, %p101
    %p104 = scmp.ne.s32.totalorder %s89, %s103
    %p105 = scmp.eq.s32.totalorder %s16, 0
    %p106 = por %p104, %p105
    %s107 = ssub.s32 %s10, %s17
    %p108 = scmp.eq.s32.totalorder %s107, 0
    %s110 = sadd.s32 %s109, 1
    %s111 = scalar_select %p108, %s109, %s110
    %p114 = pneg %p108
    %p115 = scmp.eq.s32.totalorder %s10, 1
    %p116 = por %p114, %p115
    %p117 = scmp.ne.s32.totalorder %s109, %s112
    %p118 = scmp.eq.s32.totalorder %s10, 0
    %p119 = por %p117, %p118
    %p120 = scmp.ne.s32.totalorder %s109, %s112
    %p121 = scmp.eq.s32.totalorder %s15, 1
    %p122 = por %p120, %p121
    %p123 = scmp.ne.s32.totalorder %s112, %s113
    %p124 = scmp.eq.s32.totalorder %s15, 0
    %p125 = por %p123, %p124
    %p126 = scmp.ne.s32.totalorder %s112, %s113
    %p127 = scmp.eq.s32.totalorder %s16, 1
    %p128 = por %p126, %p127
    %p130 = scmp.ne.s32.totalorder %s113, %s129
    %p131 = scmp.eq.s32.totalorder %s16, 0
    %p132 = por %p130, %p131
    %p133 = scmp.le.s32.totalorder 1, %s10
    %p134 = scmp.lt.s32.totalorder %s10, 3
    %p135 = pnand %p133, %p134
    %p136 = pneg %p135
    // Predicated region
    $region9: #{residual_block_forward.1} parent=5 // pred_check
      _
    $region10: #{residual_block_forward.1} parent=5 // pred_check_branch
      %138 = sbr.rel (%p135) target = $region12
    $region11: #{residual_block_forward.1} parent=5 // pred_region
      %s139 = ssub.s32 %s10, 1
      // Predicated region
      $region13: #{residual_block_forward.1} parent=11 // pred_check
        %p140 = pneg %p57
      $region14: #{residual_block_forward.1} parent=11 // pred_check_branch
        %142 = sbr.rel (%p140) target = $region16
      $region15: #{residual_block_forward.1} parent=11 // pred_region
        _
      $region16: #{residual_block_forward.1} parent=11 // pred_fallthru
        _
      // Predicated region
      $region17: #{residual_block_forward.1} parent=11 // pred_check
        %p143 = pneg %p78
      $region18: #{residual_block_forward.1} parent=11 // pred_check_branch
        %145 = sbr.rel (%p143) target = $region20
      $region19: #{residual_block_forward.1} parent=11 // pred_region
        _
      $region20: #{residual_block_forward.1} parent=11 // pred_fallthru
        _
      // Predicated region
      $region21: #{residual_block_forward.1} parent=11 // pred_check
        %p146 = pneg %p99
      $region22: #{residual_block_forward.1} parent=11 // pred_check_branch
        %148 = sbr.rel (%p146) target = $region24
      $region23: #{residual_block_forward.1} parent=11 // pred_region
        _
      $region24: #{residual_block_forward.1} parent=11 // pred_fallthru
        _
    $region12: #{residual_block_forward.1} parent=5 // pred_fallthru
      _
    %p149 = scmp.lt.s32.totalorder %s10, 2
    // Predicated region
    $region25: #{residual_block_forward.1} parent=5 // pred_check
      %p150 = pneg %p149
    $region26: #{residual_block_forward.1} parent=5 // pred_check_branch
      %152 = sbr.rel (%p150) target = $region28
    $region27: #{residual_block_forward.1} parent=5 // pred_region
      // Predicated region
      $region29: #{residual_block_forward.1} parent=27 // pred_check
        %p153 = pneg %p30
      $region30: #{residual_block_forward.1} parent=27 // pred_check_branch
        %155 = sbr.rel (%p153) target = $region32
      $region31: #{residual_block_forward.1} parent=27 // pred_region
        %p156 = scmp.lt.s32.totalorder %s10, 1
        %s157 = scalar_select %p156, %s10, 1
        %s158 = smul.addr %s157, 2
        %s159 = smul.addr %s158, 4
        %s160 = scalar_lea.vmem %s0, %s159
      $region32: #{residual_block_forward.1} parent=27 // pred_fallthru
        _
    $region28: #{residual_block_forward.1} parent=5 // pred_fallthru
      _
    %p161 = scmp.le.s32.totalorder 1, %s10
    %p162 = scmp.lt.s32.totalorder %s10, 3
    %p163 = pnand %p161, %p162
    %p164 = pneg %p163
    // Predicated region
    $region33: #{residual_block_forward.1} parent=5 // pred_check
      _
    $region34: #{residual_block_forward.1} parent=5 // pred_check_branch
      %166 = sbr.rel (%p163) target = $region36
    $region35: #{residual_block_forward.1} parent=5 // pred_region
      %s167 = ssub.s32 %s10, 1
      %p168 = scmp.lt.s32.totalorder %s15, 1
      %s169 = scalar_select %p168, %s15, 1
      %s170 = smul.addr %s169, 2
      %s171 = smul.addr %s170, 4
      %s172 = scalar_lea.vmem %s0, %s171
      %p173 = pneg %p36
      %p174 = pneg %p33
      %p175 = pneg %p57
      %p176 = pneg %p54
      %p177 = pneg %p78
      %p178 = pneg %p75
      %p179 = pneg %p99
      %p180 = pneg %p96
      %p181 = pneg %p125
      %p182 = pneg %p122
      %p183 = scmp.lt.s32.totalorder %s15, 1
      %s184 = scalar_select %p183, %s15, 1
      %s185 = smul.addr %s184, 2
      %s186 = smul.addr %s185, 8
      %s187 = scalar_lea.vmem %s4, %s186
      %p188 = scmp.lt.s32.totalorder %s15, 1
      %s189 = scalar_select %p188, %s15, 1
      %s190 = smul.addr %s189, 2
      %s191 = smul.addr %s190, 4
      %s192 = scalar_lea.vmem %s0, %s191
      %p193 = scmp.lt.s32.totalorder %s15, 1
      %s194 = scalar_select %p193, %s15, 1
      %s195 = smul.addr %s194, 2
      %s196 = smul.addr %s195, 8
      %s197 = scalar_lea.vmem %s4, %s196
      %v199 = vld [vmem:[%s192] sm:$0xf]
      %v200 = vld [vmem:[%s192 + $0x4] sm:$0xf]
      %v201 = vunpack.c.l.bf16 %v199
      %v202 = vunpack.c.l.bf16 %v200
      %v203 = vlaneseq
      %v204 = vshrl.u32 %v203, 7
      %v205 = vadd.s32 %v204, 8
      %v206 = vadd.s32 %v204, 16
      %v207 = vadd.s32 %v204, 24
      %v208 = vadd.s32 %v204, 32
      %v209 = vadd.s32 %v204, 40
      %v210 = vadd.s32 %v204, 48
      %v211 = vadd.s32 %v204, 56
      %v212 = vadd.s32 %v204, 64
      %v213 = vadd.s32 %v204, 72
      %v214 = vadd.s32 %v204, 80
      %v215 = vadd.s32 %v204, 88
      %v216 = vadd.s32 %v204, 96
      %v217 = vadd.s32 %v204, 104
      %v218 = vadd.s32 %v204, 112
      %v219 = vadd.s32 %v204, 120
      %vm220 = vcmp.lt.s32.totalorder %v204, 0
      %v221 = vsub.s32 0, %v204
      %v222 = vsel %vm220, %v221, %v204
      %v223 = vshrl.u32 %v222, 3
      %v224 = vand.u32 %v222, 7
      %v225 = vsub.s32 0, %v224
      %v226 = vsel %vm220, %v225, %v224
      %vm227 = vcmp.lt.s32.totalorder %v205, 0
      %v228 = vsub.s32 0, %v205
      %v229 = vsel %vm227, %v228, %v205
      %v230 = vshrl.u32 %v229, 3
      %v231 = vand.u32 %v229, 7
      %v232 = vsub.s32 0, %v231
      %v233 = vsel %vm227, %v232, %v231
      %vm234 = vcmp.lt.s32.totalorder %v206, 0
      %v235 = vsub.s32 0, %v206
      %v236 = vsel %vm234, %v235, %v206
      %v237 = vshrl.u32 %v236, 3
      %v238 = vand.u32 %v236, 7
      %v239 = vsub.s32 0, %v238
      %v240 = vsel %vm234, %v239, %v238
      %vm241 = vcmp.lt.s32.totalorder %v207, 0
      %v242 = vsub.s32 0, %v207
      %v243 = vsel %vm241, %v242, %v207
      %v244 = vshrl.u32 %v243, 3
      %v245 = vand.u32 %v243, 7
      %v246 = vsub.s32 0, %v245
      %v247 = vsel %vm241, %v246, %v245
      %vm248 = vcmp.lt.s32.totalorder %v208, 0
      %v249 = vsub.s32 0, %v208
      %v250 = vsel %vm248, %v249, %v208
      %v251 = vshrl.u32 %v250, 3
      %v252 = vand.u32 %v250, 7
      %v253 = vsub.s32 0, %v252
      %v254 = vsel %vm248, %v253, %v252
      %vm255 = vcmp.lt.s32.totalorder %v209, 0
      %v256 = vsub.s32 0, %v209
      %v257 = vsel %vm255, %v256, %v209
      %v258 = vshrl.u32 %v257, 3
      %v259 = vand.u32 %v257, 7
      %v260 = vsub.s32 0, %v259
      %v261 = vsel %vm255, %v260, %v259
      %vm262 = vcmp.lt.s32.totalorder %v210, 0
      %v263 = vsub.s32 0, %v210
      %v264 = vsel %vm262, %v263, %v210
      %v265 = vshrl.u32 %v264, 3
      %v266 = vand.u32 %v264, 7
      %v267 = vsub.s32 0, %v266
      %v268 = vsel %vm262, %v267, %v266
      %vm269 = vcmp.lt.s32.totalorder %v211, 0
      %v270 = vsub.s32 0, %v211
      %v271 = vsel %vm269, %v270, %v211
      %v272 = vshrl.u32 %v271, 3
      %v273 = vand.u32 %v271, 7
      %v274 = vsub.s32 0, %v273
      %v275 = vsel %vm269, %v274, %v273
      %vm276 = vcmp.lt.s32.totalorder %v212, 0
      %v277 = vsub.s32 0, %v212
      %v278 = vsel %vm276, %v277, %v212
      %v279 = vshrl.u32 %v278, 3
      %v280 = vand.u32 %v278, 7
      %v281 = vsub.s32 0, %v280
      %v282 = vsel %vm276, %v281, %v280
      %vm283 = vcmp.lt.s32.totalorder %v213, 0
      %v284 = vsub.s32 0, %v213
      %v285 = vsel %vm283, %v284, %v213
      %v286 = vshrl.u32 %v285, 3
      %v287 = vand.u32 %v285, 7
      %v288 = vsub.s32 0, %v287
      %v289 = vsel %vm283, %v288, %v287
      %vm290 = vcmp.lt.s32.totalorder %v214, 0
      %v291 = vsub.s32 0, %v214
      %v292 = vsel %vm290, %v291, %v214
      %v293 = vshrl.u32 %v292, 3
      %v294 = vand.u32 %v292, 7
      %v295 = vsub.s32 0, %v294
      %v296 = vsel %vm290, %v295, %v294
      %vm297 = vcmp.lt.s32.totalorder %v215, 0
      %v298 = vsub.s32 0, %v215
      %v299 = vsel %vm297, %v298, %v215
      %v300 = vshrl.u32 %v299, 3
      %v301 = vand.u32 %v299, 7
      %v302 = vsub.s32 0, %v301
      %v303 = vsel %vm297, %v302, %v301
      %vm304 = vcmp.lt.s32.totalorder %v216, 0
      %v305 = vsub.s32 0, %v216
      %v306 = vsel %vm304, %v305, %v216
      %v307 = vshrl.u32 %v306, 3
      %v308 = vand.u32 %v306, 7
      %v309 = vsub.s32 0, %v308
      %v310 = vsel %vm304, %v309, %v308
      %vm311 = vcmp.lt.s32.totalorder %v217, 0
      %v312 = vsub.s32 0, %v217
      %v313 = vsel %vm311, %v312, %v217
      %v314 = vshrl.u32 %v313, 3
      %v315 = vand.u32 %v313, 7
      %v316 = vsub.s32 0, %v315
      %v317 = vsel %vm311, %v316, %v315
      %vm318 = vcmp.lt.s32.totalorder %v218, 0
      %v319 = vsub.s32 0, %v218
      %v320 = vsel %vm318, %v319, %v218
      %v321 = vshrl.u32 %v320, 3
      %v322 = vand.u32 %v320, 7
      %v323 = vsub.s32 0, %v322
      %v324 = vsel %vm318, %v323, %v322
      %vm325 = vcmp.lt.s32.totalorder %v219, 0
      %v326 = vsub.s32 0, %v219
      %v327 = vsel %vm325, %v326, %v219
      %v328 = vshrl.u32 %v327, 3
      %v329 = vand.u32 %v327, 7
      %v330 = vsub.s32 0, %v329
      %v331 = vsel %vm325, %v330, %v329
      %vm332 = vcmp.ne.s32.totalorder %v226, 0
      %vm333 = vcmp.ne.s32.totalorder %v233, 0
      %vm334 = vcmp.ne.s32.totalorder %v240, 0
      %vm335 = vcmp.ne.s32.totalorder %v247, 0
      %vm336 = vcmp.ne.s32.totalorder %v254, 0
      %vm337 = vcmp.ne.s32.totalorder %v261, 0
      %vm338 = vcmp.ne.s32.totalorder %v268, 0
      %vm339 = vcmp.ne.s32.totalorder %v275, 0
      %vm340 = vcmp.ne.s32.totalorder %v282, 0
      %vm341 = vcmp.ne.s32.totalorder %v289, 0
      %vm342 = vcmp.ne.s32.totalorder %v296, 0
      %vm343 = vcmp.ne.s32.totalorder %v303, 0
      %vm344 = vcmp.ne.s32.totalorder %v310, 0
      %vm345 = vcmp.ne.s32.totalorder %v317, 0
      %vm346 = vcmp.ne.s32.totalorder %v324, 0
      %vm347 = vcmp.ne.s32.totalorder %v331, 0
      %vm348 = vcmp.lt.s32.totalorder %v226, 0
      %vm349 = vcmp.lt.s32.totalorder %v233, 0
      %vm350 = vcmp.lt.s32.totalorder %v240, 0
      %vm351 = vcmp.lt.s32.totalorder %v247, 0
      %vm352 = vcmp.lt.s32.totalorder %v254, 0
      %vm353 = vcmp.lt.s32.totalorder %v261, 0
      %vm354 = vcmp.lt.s32.totalorder %v268, 0
      %vm355 = vcmp.lt.s32.totalorder %v275, 0
      %vm356 = vcmp.lt.s32.totalorder %v282, 0
      %vm357 = vcmp.lt.s32.totalorder %v289, 0
      %vm358 = vcmp.lt.s32.totalorder %v296, 0
      %vm359 = vcmp.lt.s32.totalorder %v303, 0
      %vm360 = vcmp.lt.s32.totalorder %v310, 0
      %vm361 = vcmp.lt.s32.totalorder %v317, 0
      %vm362 = vcmp.lt.s32.totalorder %v324, 0
      %vm363 = vcmp.lt.s32.totalorder %v331, 0
      %vm364 = vmand %vm348, %vm332
      %vm365 = vmand %vm349, %vm333
      %vm366 = vmand %vm350, %vm334
      %vm367 = vmand %vm351, %vm335
      %vm368 = vmand %vm352, %vm336
      %vm369 = vmand %vm353, %vm337
      %vm370 = vmand %vm354, %vm338
      %vm371 = vmand %vm355, %vm339
      %vm372 = vmand %vm356, %vm340
      %vm373 = vmand %vm357, %vm341
      %vm374 = vmand %vm358, %vm342
      %vm375 = vmand %vm359, %vm343
      %vm376 = vmand %vm360, %vm344
      %vm377 = vmand %vm361, %vm345
      %vm378 = vmand %vm362, %vm346
      %vm379 = vmand %vm363, %vm347
      %v380 = vadd.s32 %v226, 8
      %v381 = vadd.s32 %v233, 8
      %v382 = vadd.s32 %v240, 8
      %v383 = vadd.s32 %v247, 8
      %v384 = vadd.s32 %v254, 8
      %v385 = vadd.s32 %v261, 8
      %v386 = vadd.s32 %v268, 8
      %v387 = vadd.s32 %v275, 8
      %v388 = vadd.s32 %v282, 8
      %v389 = vadd.s32 %v289, 8
      %v390 = vadd.s32 %v296, 8
      %v391 = vadd.s32 %v303, 8
      %v392 = vadd.s32 %v310, 8
      %v393 = vadd.s32 %v317, 8
      %v394 = vadd.s32 %v324, 8
      %v395 = vadd.s32 %v331, 8
      %v396 = vsel %vm364, %v380, %v226
      %v397 = vsel %vm365, %v381, %v233
      %v398 = vsel %vm366, %v382, %v240
      %v399 = vsel %vm367, %v383, %v247
      %v400 = vsel %vm368, %v384, %v254
      %v401 = vsel %vm369, %v385, %v261
      %v402 = vsel %vm370, %v386, %v268
      %v403 = vsel %vm371, %v387, %v275
      %v404 = vsel %vm372, %v388, %v282
      %v405 = vsel %vm373, %v389, %v289
      %v406 = vsel %vm374, %v390, %v296
      %v407 = vsel %vm375, %v391, %v303
      %v408 = vsel %vm376, %v392, %v310
      %v409 = vsel %vm377, %v393, %v317
      %v410 = vsel %vm378, %v394, %v324
      %v411 = vsel %vm379, %v395, %v331
      %v412 = vlaneseq
      %v413 = vand.u32 %v412, 127
      %vm414 = vcmp.eq.s32.totalorder %v396, %v413
      %vm415 = vcmp.eq.s32.totalorder %v397, %v413
      %vm416 = vcmp.eq.s32.totalorder %v398, %v413
      %vm417 = vcmp.eq.s32.totalorder %v399, %v413
      %vm418 = vcmp.eq.s32.totalorder %v400, %v413
      %vm419 = vcmp.eq.s32.totalorder %v401, %v413
      %vm420 = vcmp.eq.s32.totalorder %v402, %v413
      %vm421 = vcmp.eq.s32.totalorder %v403, %v413
      %vm422 = vcmp.eq.s32.totalorder %v404, %v413
      %vm423 = vcmp.eq.s32.totalorder %v405, %v413
      %vm424 = vcmp.eq.s32.totalorder %v406, %v413
      %vm425 = vcmp.eq.s32.totalorder %v407, %v413
      %vm426 = vcmp.eq.s32.totalorder %v408, %v413
      %vm427 = vcmp.eq.s32.totalorder %v409, %v413
      %vm428 = vcmp.eq.s32.totalorder %v410, %v413
      %vm429 = vcmp.eq.s32.totalorder %v411, %v413
      %v430 = vsel %vm414, 1, 0
      %v431 = vsel %vm415, 1, 0
      %v432 = vsel %vm416, 1, 0
      %v433 = vsel %vm417, 1, 0
      %v434 = vsel %vm418, 1, 0
      %v435 = vsel %vm419, 1, 0
      %v436 = vsel %vm420, 1, 0
      %v437 = vsel %vm421, 1, 0
      %v438 = vsel %vm422, 1, 0
      %v439 = vsel %vm423, 1, 0
      %v440 = vsel %vm424, 1, 0
      %v441 = vsel %vm425, 1, 0
      %v442 = vsel %vm426, 1, 0
      %v443 = vsel %vm427, 1, 0
      %v444 = vsel %vm428, 1, 0
      %v445 = vsel %vm429, 1, 0
      %v446 = vcvt.s32.f32 %v430
      %v447 = vcvt.s32.f32 %v431
      %v448 = vcvt.s32.f32 %v432
      %v449 = vcvt.s32.f32 %v433
      %v450 = vcvt.s32.f32 %v434
      %v451 = vcvt.s32.f32 %v435
      %v452 = vcvt.s32.f32 %v436
      %v453 = vcvt.s32.f32 %v437
      %v454 = vcvt.s32.f32 %v438
      %v455 = vcvt.s32.f32 %v439
      %v456 = vcvt.s32.f32 %v440
      %v457 = vcvt.s32.f32 %v441
      %v458 = vcvt.s32.f32 %v442
      %v459 = vcvt.s32.f32 %v443
      %v460 = vcvt.s32.f32 %v444
      %v461 = vcvt.s32.f32 %v445
      %vm462 = vcmp.lt.s32.totalorder %v413, 0
      %v463 = vsub.s32 0, %v413
      %v464 = vsel %vm462, %v463, %v413
      %v465 = vshrl.u32 %v464, 3
      %v466 = vand.u32 %v464, 7
      %v467 = vsub.s32 0, %v466
      %v468 = vsel %vm462, %v467, %v466
      %vm469 = vcmp.ne.s32.totalorder %v468, 0
      %vm470 = vcmp.lt.s32.totalorder %v468, 0
      %vm471 = vmand %vm470, %vm469
      %v472 = vadd.s32 %v468, 8
      %v473 = vsel %vm471, %v472, %v468
      %vm474 = vcmp.eq.s32.totalorder %v473, %v204
      %v475 = vsel %vm474, 1, 0
      %v476 = vcvt.s32.f32 %v475
      %vm477 = vcmp.lt.s32.totalorder %v204, 0
      %v478 = vsub.s32 0, %v204
      %v479 = vsel %vm477, %v478, %v204
      %v480 = vshrl.u32 %v479, 4
      %v481 = vand.u32 %v479, 15
      %v482 = vsub.s32 0, %v481
      %v483 = vsel %vm477, %v482, %v481
      %vm484 = vcmp.lt.s32.totalorder %v205, 0
      %v485 = vsub.s32 0, %v205
      %v486 = vsel %vm484, %v485, %v205
      %v487 = vshrl.u32 %v486, 4
      %v488 = vand.u32 %v486, 15
      %v489 = vsub.s32 0, %v488
      %v490 = vsel %vm484, %v489, %v488
      %vm491 = vcmp.ne.s32.totalorder %v483, 0
      %vm492 = vcmp.ne.s32.totalorder %v490, 0
      %vm493 = vcmp.lt.s32.totalorder %v483, 0
      %vm494 = vcmp.lt.s32.totalorder %v490, 0
      %vm495 = vmand %vm493, %vm491
      %vm496 = vmand %vm494, %vm492
      %v497 = vadd.s32 %v483, 16
      %v498 = vadd.s32 %v490, 16
      %v499 = vsel %vm495, %v497, %v483
      %v500 = vsel %vm496, %v498, %v490
      %vm501 = vcmp.eq.s32.totalorder %v499, 0
      %vm502 = vcmp.eq.s32.totalorder %v500, 0
      %vm503 = vcmp.eq.s32.totalorder %v499, 15
      %vm504 = vcmp.eq.s32.totalorder %v500, 15
      %v505 = vld [vmem:[%s2] sm:$0xff]
      %v506 = vld [vmem:[%s2 + $0x8] sm:$0xff]
      %v507 = vld [vmem:[%s2 + $0x10] sm:$0xff]
      %v508 = vld [vmem:[%s2 + $0x18] sm:$0xff]
      %v509 = vld [vmem:[%s2 + $0x20] sm:$0xff]
      %v510 = vld [vmem:[%s2 + $0x28] sm:$0xff]
      %v511 = vld [vmem:[%s2 + $0x30] sm:$0xff]
      %v512 = vld [vmem:[%s2 + $0x38] sm:$0xff]
      %v515 = vunpack.c.l.b16 %v199
      %v516 = vunpack.c.l.b16 %v200
      %v517 = vpack.c.b16 %v516, %v515
      %v526 = vunpack.c.l.b16 %v505
      %v527 = vunpack.c.h.b16 %v505
      %v528 = vunpack.c.l.b16 %v506
      %v529 = vunpack.c.h.b16 %v506
      %v530 = vunpack.c.l.b16 %v507
      %v531 = vunpack.c.h.b16 %v507
      %v532 = vunpack.c.l.b16 %v508
      %v533 = vunpack.c.h.b16 %v508
      %v534 = vunpack.c.l.b16 %v509
      %v535 = vunpack.c.h.b16 %v509
      %v536 = vunpack.c.l.b16 %v510
      %v537 = vunpack.c.h.b16 %v510
      %v538 = vunpack.c.l.b16 %v511
      %v539 = vunpack.c.h.b16 %v511
      %v540 = vunpack.c.l.b16 %v512
      %v541 = vunpack.c.h.b16 %v512
      %v542 = vpack.c.b16 %v528, %v526
      %v543 = vpack.c.b16 %v529, %v527
      %v544 = vpack.c.b16 %v532, %v530
      %v545 = vpack.c.b16 %v533, %v531
      %v546 = vpack.c.b16 %v536, %v534
      %v547 = vpack.c.b16 %v537, %v535
      %v548 = vpack.c.b16 %v540, %v538
      %v549 = vpack.c.b16 %v541, %v539
      %vm558 = vcmask 523264
      %v560 = vsel %vm558, %v517, 0
      %562 = vmatprep.subr.bf16.mxu0 %v543
      %563 = vmatpush1.bf16.msra.mxu0 %v542
      %564 = vmatprep.subr.bf16.mxu0 %v545
      %565 = vmatpush1.bf16.msra.mxu0 %v544
      %566 = vmatprep.subr.bf16.mxu0 %v547
      %567 = vmatpush1.bf16.msra.mxu0 %v546
      %568 = vmatprep.subr.bf16.mxu0 %v549
      %569 = vmatpush1.bf16.msra.mxu0 %v548
      %570 = vmatprep.subr.bf16.mxu0 0
      %571 = vmatpush1.bf16.msra.mxu0 0
      %572 = vmatprep.subr.bf16.mxu0 0
      %573 = vmatpush1.bf16.msra.mxu0 0
      %574 = vmatprep.subr.bf16.mxu0 0
      %575 = vmatpush1.bf16.msra.mxu0 0
      %576 = vmatprep.subr.bf16.mxu0 0
      %577 = vmatpush1.bf16.msra.mxu0 0
      %578 = vmatprep.subr.bf16.mxu0 0
      %579 = vmatpush1.bf16.msra.mxu0 0
      %580 = vmatprep.subr.bf16.mxu0 0
      %581 = vmatpush1.bf16.msra.mxu0 0
      %582 = vmatprep.subr.bf16.mxu0 0
      %583 = vmatpush1.bf16.msra.mxu0 0
      %584 = vmatprep.subr.bf16.mxu0 0
      %585 = vmatpush1.bf16.msra.mxu0 0
      %586 = vmatprep.subr.bf16.mxu0 0
      %587 = vmatpush1.bf16.msra.mxu0 0
      %588 = vmatprep.subr.bf16.mxu0 0
      %589 = vmatpush1.bf16.msra.mxu0 0
      %590 = vmatprep.subr.bf16.mxu0 0
      %591 = vmatpush1.bf16.msra.mxu0 0
      %592 = vmatprep.subr.bf16.mxu0 0
      %593 = vmatpush1.bf16.msra.mxu0 0
      %594 = vmatprep.mubr.bf16.mxu0 0
      %595 = vmatmul.mubr.bf16.gmra.mrb[0].mxu0 %v560
      %v596 = vpop.f32.mrb[0].mxu0
      %v597 = vadd.f32 0.0, %v596
      %v598 = vpop.f32.mrb[0].mxu0
      %v599 = vadd.f32 0.0, %v598
      %v600 = vpop.f32.mrb[0].mxu0
      %v601 = vadd.f32 0.0, %v600
      %v602 = vpop.f32.mrb[0].mxu0
      %v603 = vadd.f32 0.0, %v602
      %604 = vdwg.mxu0
      %v605 = vld [vmem:[%s1] sm:$0xf]
      %v606 = vld [vmem:[%s1 + $0x4] sm:$0xf]
      %v607 = vld [vmem:[%s1 + $0x8] sm:$0xf]
      %v608 = vld [vmem:[%s1 + $0xc] sm:$0xf]
      %v609 = vld [vmem:[%s1 + $0x10] sm:$0xf]
      %v610 = vld [vmem:[%s1 + $0x14] sm:$0xf]
      %v611 = vld [vmem:[%s1 + $0x18] sm:$0xf]
      %v612 = vld [vmem:[%s1 + $0x1c] sm:$0xf]
      %s613 = scalar_lea.vmem %s1, 32
      %v614 = vld [vmem:[%s613] sm:$0xf]
      %v615 = vld [vmem:[%s613 + $0x4] sm:$0xf]
      %v616 = vld [vmem:[%s613 + $0x8] sm:$0xf]
      %v617 = vld [vmem:[%s613 + $0xc] sm:$0xf]
      %v618 = vld [vmem:[%s613 + $0x10] sm:$0xf]
      %v619 = vld [vmem:[%s613 + $0x14] sm:$0xf]
      %v620 = vld [vmem:[%s613 + $0x18] sm:$0xf]
      %v621 = vld [vmem:[%s613 + $0x1c] sm:$0xf]
      %v622 = vrot.slane %v201, 7
      %v623 = vrot.slane %v202, 7
      %vm624 = vcmp.lt.s32.totalorder %v204, 1
      %v625 = vsel %vm624, %v622, %v623
      %v626 = vsel %vm624, %v623, %v622
      %v627 = vsel %vm501, 1, 0
      %v628 = vsel %vm502, 1, 0
      %vm629 = vcmp.eq.s32.totalorder %v627, 1
      %vm630 = vcmp.eq.s32.totalorder %v628, 1
      %v631 = vsel %vm629, 0.0, %v626
      %v632 = vsel %vm630, 0.0, %v625
      %v633 = vpack.c.bf16 %v632, %v631
      %v634 = vrot.slane %v201, 1
      %v635 = vrot.slane %v202, 1
      %vm636 = vcmp.lt.s32.totalorder %v204, 7
      %v637 = vsel %vm636, %v634, %v635
      %v638 = vsel %vm636, %v635, %v634
      %v639 = vsel %vm503, 1, 0
      %v640 = vsel %vm504, 1, 0
      %vm641 = vcmp.eq.s32.totalorder %v639, 1
      %vm642 = vcmp.eq.s32.totalorder %v640, 1
      %v643 = vsel %vm641, 0.0, %v637
      %v644 = vsel %vm642, 0.0, %v638
      %v645 = vpack.c.bf16 %v644, %v643
      %v654 = vunpack.c.l.b16 %v605
      %v655 = vunpack.c.l.b16 %v606
      %v656 = vunpack.c.l.b16 %v607
      %v657 = vunpack.c.l.b16 %v608
      %v658 = vunpack.c.l.b16 %v609
      %v659 = vunpack.c.l.b16 %v610
      %v660 = vunpack.c.l.b16 %v611
      %v661 = vunpack.c.l.b16 %v612
      %v662 = vpack.c.b16 %v655, %v654
      %v663 = vpack.c.b16 %v657, %v656
      %v664 = vpack.c.b16 %v659, %v658
      %v665 = vpack.c.b16 %v661, %v660
      %v671 = vsel %vm558, %v633, 0
      %673 = vmatprep.subr.bf16.mxu0 0
      %674 = vmatpush1.bf16.msra.mxu0 %v662
      %675 = vmatprep.subr.bf16.mxu0 0
      %676 = vmatpush1.bf16.msra.mxu0 %v663
      %677 = vmatprep.subr.bf16.mxu0 0
      %678 = vmatpush1.bf16.msra.mxu0 %v664
      %679 = vmatprep.subr.bf16.mxu0 0
      %680 = vmatpush1.bf16.msra.mxu0 %v665
      %681 = vmatprep.subr.bf16.mxu0 0
      %682 = vmatpush1.bf16.msra.mxu0 0
      %683 = vmatprep.subr.bf16.mxu0 0
      %684 = vmatpush1.bf16.msra.mxu0 0
      %685 = vmatprep.subr.bf16.mxu0 0
      %686 = vmatpush1.bf16.msra.mxu0 0
      %687 = vmatprep.subr.bf16.mxu0 0
      %688 = vmatpush1.bf16.msra.mxu0 0
      %689 = vmatprep.subr.bf16.mxu0 0
      %690 = vmatpush1.bf16.msra.mxu0 0
      %691 = vmatprep.subr.bf16.mxu0 0
      %692 = vmatpush1.bf16.msra.mxu0 0
      %693 = vmatprep.subr.bf16.mxu0 0
      %694 = vmatpush1.bf16.msra.mxu0 0
      %695 = vmatprep.subr.bf16.mxu0 0
      %696 = vmatpush1.bf16.msra.mxu0 0
      %697 = vmatprep.subr.bf16.mxu0 0
      %698 = vmatpush1.bf16.msra.mxu0 0
      %699 = vmatprep.subr.bf16.mxu0 0
      %700 = vmatpush1.bf16.msra.mxu0 0
      %701 = vmatprep.subr.bf16.mxu0 0
      %702 = vmatpush1.bf16.msra.mxu0 0
      %703 = vmatprep.subr.bf16.mxu0 0
      %704 = vmatpush1.bf16.msra.mxu0 0
      %705 = vmatprep.mubr.bf16.mxu0 0
      %706 = vmatmul.mubr.bf16.gmra.mrb[0].mxu0 %v671
      %v707 = vpop.f32.mrb[0].mxu0
      %v708 = vadd.f32 0.0, %v707
      %v709 = vpop.f32.mrb[0].mxu0
      %v710 = vpop.f32.mrb[0].mxu0
      %v711 = vadd.f32 0.0, %v710
      %v712 = vpop.f32.mrb[0].mxu0
      %713 = vdwg.mxu0
      %v714 = vadd.f32 %v597, %v708
      %v715 = vadd.f32 %v601, %v711
      %v724 = vunpack.c.l.b16 %v614
      %v725 = vunpack.c.l.b16 %v615
      %v726 = vunpack.c.l.b16 %v616
      %v727 = vunpack.c.l.b16 %v617
      %v728 = vunpack.c.l.b16 %v618
      %v729 = vunpack.c.l.b16 %v619
      %v730 = vunpack.c.l.b16 %v620
      %v731 = vunpack.c.l.b16 %v621
      %v732 = vpack.c.b16 %v725, %v724
      %v733 = vpack.c.b16 %v727, %v726
      %v734 = vpack.c.b16 %v729, %v728
      %v735 = vpack.c.b16 %v731, %v730
      %v741 = vsel %vm558, %v645, 0
      %743 = vmatprep.subr.bf16.mxu0 0
      %744 = vmatpush1.bf16.msra.mxu0 %v732
      %745 = vmatprep.subr.bf16.mxu0 0
      %746 = vmatpush1.bf16.msra.mxu0 %v733
      %747 = vmatprep.subr.bf16.mxu0 0
      %748 = vmatpush1.bf16.msra.mxu0 %v734
      %749 = vmatprep.subr.bf16.mxu0 0
      %750 = vmatpush1.bf16.msra.mxu0 %v735
      %751 = vmatprep.subr.bf16.mxu0 0
      %752 = vmatpush1.bf16.msra.mxu0 0
      %753 = vmatprep.subr.bf16.mxu0 0
      %754 = vmatpush1.bf16.msra.mxu0 0
      %755 = vmatprep.subr.bf16.mxu0 0
      %756 = vmatpush1.bf16.msra.mxu0 0
      %757 = vmatprep.subr.bf16.mxu0 0
      %758 = vmatpush1.bf16.msra.mxu0 0
      %759 = vmatprep.subr.bf16.mxu0 0
      %760 = vmatpush1.bf16.msra.mxu0 0
      %761 = vmatprep.subr.bf16.mxu0 0
      %762 = vmatpush1.bf16.msra.mxu0 0
      %763 = vmatprep.subr.bf16.mxu0 0
      %764 = vmatpush1.bf16.msra.mxu0 0
      %765 = vmatprep.subr.bf16.mxu0 0
      %766 = vmatpush1.bf16.msra.mxu0 0
      %767 = vmatprep.subr.bf16.mxu0 0
      %768 = vmatpush1.bf16.msra.mxu0 0
      %769 = vmatprep.subr.bf16.mxu0 0
      %770 = vmatpush1.bf16.msra.mxu0 0
      %771 = vmatprep.subr.bf16.mxu0 0
      %772 = vmatpush1.bf16.msra.mxu0 0
      %773 = vmatprep.subr.bf16.mxu0 0
      %774 = vmatpush1.bf16.msra.mxu0 0
      %775 = vmatprep.mubr.bf16.mxu0 0
      %776 = vmatmul.mubr.bf16.gmra.mrb[0].mxu0 %v741
      %v777 = vpop.f32.mrb[0].mxu0
      %v778 = vadd.f32 0.0, %v777
      %v779 = vpop.f32.mrb[0].mxu0
      %v780 = vpop.f32.mrb[0].mxu0
      %v781 = vadd.f32 0.0, %v780
      %v782 = vpop.f32.mrb[0].mxu0
      %783 = vdwg.mxu0
      %v784 = vadd.f32 %v714, %v778
      %v785 = vadd.f32 %v715, %v781
      %v786 = vadd.f32 %v784, %v785
      %v787 = vrot.slane %v786, 4
      %v788 = vadd.f32 %v786, %v787
      %v789 = vrot.slane %v788, 2
      %v790 = vadd.f32 %v788, %v789
      %v791 = vrot.slane %v790, 1
      %v792 = vadd.f32 %v790, %v791
      %v793 = vmul.f32 %v784, %v784
      %v794 = vmul.f32 %v785, %v785
      %v795 = vadd.f32 %v793, %v794
      %v796 = vrot.slane %v795, 4
      %v797 = vadd.f32 %v795, %v796
      %v798 = vrot.slane %v797, 2
      %v799 = vadd.f32 %v797, %v798
      %v800 = vrot.slane %v799, 1
      %v801 = vadd.f32 %v799, %v800
      %vm802 = vcmask 1040384
      %v803 = vsel %vm802, %v792, %v801
      %804 = vmatprep.subr.mxu0 0.0
      %805 = vmatpush1.msra.mxu0 %v446
      %806 = vmatprep.subr.mxu0 0.0
      %807 = vmatpush1.msra.mxu0 %v447
      %808 = vmatprep.subr.mxu0 0.0
      %809 = vmatpush1.msra.mxu0 %v448
      %810 = vmatprep.subr.mxu0 0.0
      %811 = vmatpush1.msra.mxu0 %v449
      %812 = vmatprep.subr.mxu0 0.0
      %813 = vmatpush1.msra.mxu0 %v450
      %814 = vmatprep.subr.mxu0 0.0
      %815 = vmatpush1.msra.mxu0 %v451
      %816 = vmatprep.subr.mxu0 0.0
      %817 = vmatpush1.msra.mxu0 %v452
      %818 = vmatprep.subr.mxu0 0.0
      %819 = vmatpush1.msra.mxu0 %v453
      %820 = vmatprep.subr.mxu0 0.0
      %821 = vmatpush1.msra.mxu0 %v454
      %822 = vmatprep.subr.mxu0 0.0
      %823 = vmatpush1.msra.mxu0 %v455
      %824 = vmatprep.subr.mxu0 0.0
      %825 = vmatpush1.msra.mxu0 %v456
      %826 = vmatprep.subr.mxu0 0.0
      %827 = vmatpush1.msra.mxu0 %v457
      %828 = vmatprep.subr.mxu0 0.0
      %829 = vmatpush1.msra.mxu0 %v458
      %830 = vmatprep.subr.mxu0 0.0
      %831 = vmatpush1.msra.mxu0 %v459
      %832 = vmatprep.subr.mxu0 0.0
      %833 = vmatpush1.msra.mxu0 %v460
      %834 = vmatprep.subr.mxu0 0.0
      %835 = vmatpush1.msra.mxu0 %v461
      %836 = vmatprep.subr.mxu0 0.0
      %837 = vmatpush1.msra.mxu0 0.0
      %838 = vmatprep.subr.mxu0 0.0
      %839 = vmatpush1.msra.mxu0 0.0
      %840 = vmatprep.subr.mxu0 0.0
      %841 = vmatpush1.msra.mxu0 0.0
      %842 = vmatprep.subr.mxu0 0.0
      %843 = vmatpush1.msra.mxu0 0.0
      %844 = vmatprep.subr.mxu0 0.0
      %845 = vmatpush1.msra.mxu0 0.0
      %846 = vmatprep.subr.mxu0 0.0
      %847 = vmatpush1.msra.mxu0 0.0
      %848 = vmatprep.subr.mxu0 0.0
      %849 = vmatpush1.msra.mxu0 0.0
      %850 = vmatprep.subr.mxu0 0.0
      %851 = vmatpush1.msra.mxu0 0.0
      %852 = vmatprep.subr.mxu0 0.0
      %853 = vmatpush1.msra.mxu0 0.0
      %854 = vmatprep.subr.mxu0 0.0
      %855 = vmatpush1.msra.mxu0 0.0
      %856 = vmatprep.subr.mxu0 0.0
      %857 = vmatpush1.msra.mxu0 0.0
      %858 = vmatprep.subr.mxu0 0.0
      %859 = vmatpush1.msra.mxu0 0.0
      %860 = vmatprep.subr.mxu0 0.0
      %861 = vmatpush1.msra.mxu0 0.0
      %862 = vmatprep.subr.mxu0 0.0
      %863 = vmatpush1.msra.mxu0 0.0
      %864 = vmatprep.subr.mxu0 0.0
      %865 = vmatpush1.msra.mxu0 0.0
      %866 = vmatprep.subr.mxu0 0.0
      %867 = vmatpush1.msra.mxu0 0.0
      %868 = vmatprep.mubr.f32.mxu0 0.0
      %869 = vmatmul.mubr.f32.gmra.mrb[0].mxu0 %v803
      %v870 = vpop.f32.mrb[0].mxu0
      %v871 = vadd.f32 0.0, %v870
      %v872 = vpop.f32.mrb[0].mxu0
      %873 = vdwg.mxu0
      %v874 = vmul.f32 %v871, 0.00390625
      %v875 = vmul.f32 %v874, %v874
      %v877 = vrot.slane %v875, 7
      %v879 = vsub.f32 %v874, %v877
      %v880 = vmax.f32 %v879, 0.0
      %v881 = vadd.f32 %v880, 1e-05
      %v882 = vrsqrt.pop %v881
      %v883 = vsub.f32 0.0, %v874
      %v885 = vrot.slane %v882, 1
      %v887 = vmul.f32 %v883, %v885
      %v889 = vrot.slane %v887, 7
      %v891 = vsel %vm802, %v885, %v889
      %vm892 = vcmask 64512
      %v894 = vsel %vm892, %v891, 0
      %896 = vmatprep.subr.mxu0 0.0
      %897 = vmatpush1.msra.mxu0 %v476
      %898 = vmatprep.subr.mxu0 0.0
      %899 = vmatpush1.msra.mxu0 0.0
      %900 = vmatprep.subr.mxu0 0.0
      %901 = vmatpush1.msra.mxu0 0.0
      %902 = vmatprep.subr.mxu0 0.0
      %903 = vmatpush1.msra.mxu0 0.0
      %904 = vmatprep.subr.mxu0 0.0
      %905 = vmatpush1.msra.mxu0 0.0
      %906 = vmatprep.subr.mxu0 0.0
      %907 = vmatpush1.msra.mxu0 0.0
      %908 = vmatprep.subr.mxu0 0.0
      %909 = vmatpush1.msra.mxu0 0.0
      %910 = vmatprep.subr.mxu0 0.0
      %911 = vmatpush1.msra.mxu0 0.0
      %912 = vmatprep.subr.mxu0 0.0
      %913 = vmatpush1.msra.mxu0 0.0
      %914 = vmatprep.subr.mxu0 0.0
      %915 = vmatpush1.msra.mxu0 0.0
      %916 = vmatprep.subr.mxu0 0.0
      %917 = vmatpush1.msra.mxu0 0.0
      %918 = vmatprep.subr.mxu0 0.0
      %919 = vmatpush1.msra.mxu0 0.0
      %920 = vmatprep.subr.mxu0 0.0
      %921 = vmatpush1.msra.mxu0 0.0
      %922 = vmatprep.subr.mxu0 0.0
      %923 = vmatpush1.msra.mxu0 0.0
      %924 = vmatprep.subr.mxu0 0.0
      %925 = vmatpush1.msra.mxu0 0.0
      %926 = vmatprep.subr.mxu0 0.0
      %927 = vmatpush1.msra.mxu0 0.0
      %928 = vmatprep.subr.mxu0 0.0
      %929 = vmatpush1.msra.mxu0 0.0
      %930 = vmatprep.subr.mxu0 0.0
      %931 = vmatpush1.msra.mxu0 0.0
      %932 = vmatprep.subr.mxu0 0.0
      %933 = vmatpush1.msra.mxu0 0.0
      %934 = vmatprep.subr.mxu0 0.0
      %935 = vmatpush1.msra.mxu0 0.0
      %936 = vmatprep.subr.mxu0 0.0
      %937 = vmatpush1.msra.mxu0 0.0
      %938 = vmatprep.subr.mxu0 0.0
      %939 = vmatpush1.msra.mxu0 0.0
      %940 = vmatprep.subr.mxu0 0.0
      %941 = vmatpush1.msra.mxu0 0.0
      %942 = vmatprep.subr.mxu0 0.0
      %943 = vmatpush1.msra.mxu0 0.0
      %944 = vmatprep.subr.mxu0 0.0
      %945 = vmatpush1.msra.mxu0 0.0
      %946 = vmatprep.subr.mxu0 0.0
      %947 = vmatpush1.msra.mxu0 0.0
      %948 = vmatprep.subr.mxu0 0.0
      %949 = vmatpush1.msra.mxu0 0.0
      %950 = vmatprep.subr.mxu0 0.0
      %951 = vmatpush1.msra.mxu0 0.0
      %952 = vmatprep.subr.mxu0 0.0
      %953 = vmatpush1.msra.mxu0 0.0
      %954 = vmatprep.subr.mxu0 0.0
      %955 = vmatpush1.msra.mxu0 0.0
      %956 = vmatprep.subr.mxu0 0.0
      %957 = vmatpush1.msra.mxu0 0.0
      %958 = vmatprep.subr.mxu0 0.0
      %959 = vmatpush1.msra.mxu0 0.0
      %960 = vmatprep.mubr.f32.mxu0 0.0
      %961 = vmatmul.mubr.f32.gmra.mrb[0].mxu0 %v894
      %v962 = vpop.f32.mrb[0].mxu0
      %v963 = vadd.f32 0.0, %v962
      %v964 = vpop.f32.mrb[0].mxu0
      %965 = vdwg.mxu0
      %v966 = vlaneseq
      %v967 = vshrl.u32 %v966, 7
      %v968 = vsub.s32 0, %v967
      %v969 = vrot.slane %v963, %v968
      %v970 = vmul.f32 %v784, %v969
      %v971 = vmul.f32 %v785, %v969
      %v972 = vlaneseq
      %v973 = vshrl.u32 %v972, 7
      %v974 = vsub.s32 1, %v973
      %v975 = vrot.slane %v963, %v974
      %v976 = vadd.f32 %v970, %v975
      %v977 = vadd.f32 %v971, %v975
      %v978 = vmax.f32 %v976, 0.0
      %v979 = vmax.f32 %v977, 0.0
      %v980 = vpack.c.bf16 %v979, %v978
      %s981 = scalar_lea.vmem %s3, 64
      %v982 = vld [vmem:[%s981] sm:$0xf]
      %v983 = vld [vmem:[%s981 + $0x4] sm:$0xf]
      %v984 = vld [vmem:[%s981 + $0x8] sm:$0xf]
      %v985 = vld [vmem:[%s981 + $0xc] sm:$0xf]
      %v986 = vld [vmem:[%s981 + $0x10] sm:$0xf]
      %v987 = vld [vmem:[%s981 + $0x14] sm:$0xf]
      %v988 = vld [vmem:[%s981 + $0x18] sm:$0xf]
      %v989 = vld [vmem:[%s981 + $0x1c] sm:$0xf]
      %v990 = vld [vmem:[%s981 + $0x20] sm:$0xf]
      %v991 = vld [vmem:[%s981 + $0x24] sm:$0xf]
      %v992 = vld [vmem:[%s981 + $0x28] sm:$0xf]
      %v993 = vld [vmem:[%s981 + $0x2c] sm:$0xf]
      %v994 = vld [vmem:[%s981 + $0x30] sm:$0xf]
      %v995 = vld [vmem:[%s981 + $0x34] sm:$0xf]
      %v996 = vld [vmem:[%s981 + $0x38] sm:$0xf]
      %v997 = vld [vmem:[%s981 + $0x3c] sm:$0xf]
      %v998 = vld [vmem:[%s3] sm:$0xf]
      %v999 = vld [vmem:[%s3 + $0x4] sm:$0xf]
      %v1000 = vld [vmem:[%s3 + $0x8] sm:$0xf]
      %v1001 = vld [vmem:[%s3 + $0xc] sm:$0xf]
      %v1002 = vld [vmem:[%s3 + $0x10] sm:$0xf]
      %v1003 = vld [vmem:[%s3 + $0x14] sm:$0xf]
      %v1004 = vld [vmem:[%s3 + $0x18] sm:$0xf]
      %v1005 = vld [vmem:[%s3 + $0x1c] sm:$0xf]
      %v1006 = vld [vmem:[%s3 + $0x20] sm:$0xf]
      %v1007 = vld [vmem:[%s3 + $0x24] sm:$0xf]
      %v1008 = vld [vmem:[%s3 + $0x28] sm:$0xf]
      %v1009 = vld [vmem:[%s3 + $0x2c] sm:$0xf]
      %v1010 = vld [vmem:[%s3 + $0x30] sm:$0xf]
      %v1011 = vld [vmem:[%s3 + $0x34] sm:$0xf]
      %v1012 = vld [vmem:[%s3 + $0x38] sm:$0xf]
      %v1013 = vld [vmem:[%s3 + $0x3c] sm:$0xf]
      %s1014 = scalar_lea.vmem %s3, 128
      %v1015 = vld [vmem:[%s1014] sm:$0xf]
      %v1016 = vld [vmem:[%s1014 + $0x4] sm:$0xf]
      %v1017 = vld [vmem:[%s1014 + $0x8] sm:$0xf]
      %v1018 = vld [vmem:[%s1014 + $0xc] sm:$0xf]
      %v1019 = vld [vmem:[%s1014 + $0x10] sm:$0xf]
      %v1020 = vld [vmem:[%s1014 + $0x14] sm:$0xf]
      %v1021 = vld [vmem:[%s1014 + $0x18] sm:$0xf]
      %v1022 = vld [vmem:[%s1014 + $0x1c] sm:$0xf]
      %v1023 = vld [vmem:[%s1014 + $0x20] sm:$0xf]
      %v1024 = vld [vmem:[%s1014 + $0x24] sm:$0xf]
      %v1025 = vld [vmem:[%s1014 + $0x28] sm:$0xf]
      %v1026 = vld [vmem:[%s1014 + $0x2c] sm:$0xf]
      %v1027 = vld [vmem:[%s1014 + $0x30] sm:$0xf]
      %v1028 = vld [vmem:[%s1014 + $0x34] sm:$0xf]
      %v1029 = vld [vmem:[%s1014 + $0x38] sm:$0xf]
      %v1030 = vld [vmem:[%s1014 + $0x3c] sm:$0xf]
      %v1031 = vrot.slane %v978, 7
      %v1032 = vrot.slane %v979, 7
      %v1033 = vsel %vm624, %v1031, %v1032
      %v1034 = vsel %vm624, %v1032, %v1031
      %v1035 = vsel %vm629, 0.0, %v1034
      %v1036 = vsel %vm630, 0.0, %v1033
      %v1037 = vpack.c.bf16 %v1036, %v1035
      %v1038 = vrot.slane %v978, 1
      %v1039 = vrot.slane %v979, 1
      %v1040 = vsel %vm636, %v1038, %v1039
      %v1041 = vsel %vm636, %v1039, %v1038
      %v1042 = vsel %vm641, 0.0, %v1040
      %v1043 = vsel %vm642, 0.0, %v1041
      %v1044 = vpack.c.bf16 %v1043, %v1042
      %v1061 = vunpack.c.l.b16 %v998
      %v1062 = vunpack.c.l.b16 %v999
      %v1063 = vunpack.c.l.b16 %v1000
      %v1064 = vunpack.c.l.b16 %v1001
      %v1065 = vunpack.c.l.b16 %v1002
      %v1066 = vunpack.c.l.b16 %v1003
      %v1067 = vunpack.c.l.b16 %v1004
      %v1068 = vunpack.c.l.b16 %v1005
      %v1069 = vunpack.c.l.b16 %v1006
      %v1070 = vunpack.c.l.b16 %v1007
      %v1071 = vunpack.c.l.b16 %v1008
      %v1072 = vunpack.c.l.b16 %v1009
      %v1073 = vunpack.c.l.b16 %v1010
      %v1074 = vunpack.c.l.b16 %v1011
      %v1075 = vunpack.c.l.b16 %v1012
      %v1076 = vunpack.c.l.b16 %v1013
      %v1077 = vpack.c.b16 %v1062, %v1061
      %v1078 = vpack.c.b16 %v1064, %v1063
      %v1079 = vpack.c.b16 %v1066, %v1065
      %v1080 = vpack.c.b16 %v1068, %v1067
      %v1081 = vpack.c.b16 %v1070, %v1069
      %v1082 = vpack.c.b16 %v1072, %v1071
      %v1083 = vpack.c.b16 %v1074, %v1073
      %v1084 = vpack.c.b16 %v1076, %v1075
      %1093 = vmatprep.subr.bf16.mxu0 0
      %1094 = vmatpush1.bf16.msra.mxu0 %v1077
      %1095 = vmatprep.subr.bf16.mxu0 0
      %1096 = vmatpush1.bf16.msra.mxu0 %v1078
      %1097 = vmatprep.subr.bf16.mxu0 0
      %1098 = vmatpush1.bf16.msra.mxu0 %v1079
      %1099 = vmatprep.subr.bf16.mxu0 0
      %1100 = vmatpush1.bf16.msra.mxu0 %v1080
      %1101 = vmatprep.subr.bf16.mxu0 0
      %1102 = vmatpush1.bf16.msra.mxu0 %v1081
      %1103 = vmatprep.subr.bf16.mxu0 0
      %1104 = vmatpush1.bf16.msra.mxu0 %v1082
      %1105 = vmatprep.subr.bf16.mxu0 0
      %1106 = vmatpush1.bf16.msra.mxu0 %v1083
      %1107 = vmatprep.subr.bf16.mxu0 0
      %1108 = vmatpush1.bf16.msra.mxu0 %v1084
      %1109 = vmatprep.subr.bf16.mxu0 0
      %1110 = vmatpush1.bf16.msra.mxu0 0
      %1111 = vmatprep.subr.bf16.mxu0 0
      %1112 = vmatpush1.bf16.msra.mxu0 0
      %1113 = vmatprep.subr.bf16.mxu0 0
      %1114 = vmatpush1.bf16.msra.mxu0 0
      %1115 = vmatprep.subr.bf16.mxu0 0
      %1116 = vmatpush1.bf16.msra.mxu0 0
      %1117 = vmatprep.subr.bf16.mxu0 0
      %1118 = vmatpush1.bf16.msra.mxu0 0
      %1119 = vmatprep.subr.bf16.mxu0 0
      %1120 = vmatpush1.bf16.msra.mxu0 0
      %1121 = vmatprep.subr.bf16.mxu0 0
      %1122 = vmatpush1.bf16.msra.mxu0 0
      %1123 = vmatprep.subr.bf16.mxu0 0
      %1124 = vmatpush1.bf16.msra.mxu0 0
      %1125 = vmatprep.mubr.bf16.mxu0 0
      %1126 = vmatmul.mubr.bf16.gmra.mrb[0].mxu0 %v1037
      %v1127 = vpop.f32.mrb[0].mxu0
      %v1128 = vadd.f32 0.0, %v1127
      %v1129 = vpop.f32.mrb[0].mxu0
      %v1130 = vpop.f32.mrb[0].mxu0
      %v1131 = vadd.f32 0.0, %v1130
      %v1132 = vpop.f32.mrb[0].mxu0
      %1133 = vdwg.mxu0
      %v1150 = vunpack.c.l.b16 %v982
      %v1151 = vunpack.c.l.b16 %v983
      %v1152 = vunpack.c.l.b16 %v984
      %v1153 = vunpack.c.l.b16 %v985
      %v1154 = vunpack.c.l.b16 %v986
      %v1155 = vunpack.c.l.b16 %v987
      %v1156 = vunpack.c.l.b16 %v988
      %v1157 = vunpack.c.l.b16 %v989
      %v1158 = vunpack.c.l.b16 %v990
      %v1159 = vunpack.c.l.b16 %v991
      %v1160 = vunpack.c.l.b16 %v992
      %v1161 = vunpack.c.l.b16 %v993
      %v1162 = vunpack.c.l.b16 %v994
      %v1163 = vunpack.c.l.b16 %v995
      %v1164 = vunpack.c.l.b16 %v996
      %v1165 = vunpack.c.l.b16 %v997
      %v1166 = vpack.c.b16 %v1151, %v1150
      %v1167 = vpack.c.b16 %v1153, %v1152
      %v1168 = vpack.c.b16 %v1155, %v1154
      %v1169 = vpack.c.b16 %v1157, %v1156
      %v1170 = vpack.c.b16 %v1159, %v1158
      %v1171 = vpack.c.b16 %v1161, %v1160
      %v1172 = vpack.c.b16 %v1163, %v1162
      %v1173 = vpack.c.b16 %v1165, %v1164
      %1182 = vmatprep.subr.bf16.mxu0 0
      %1183 = vmatpush1.bf16.msra.mxu0 %v1166
      %1184 = vmatprep.subr.bf16.mxu0 0
      %1185 = vmatpush1.bf16.msra.mxu0 %v1167
      %1186 = vmatprep.subr.bf16.mxu0 0
      %1187 = vmatpush1.bf16.msra.mxu0 %v1168
      %1188 = vmatprep.subr.bf16.mxu0 0
      %1189 = vmatpush1.bf16.msra.mxu0 %v1169
      %1190 = vmatprep.subr.bf16.mxu0 0
      %1191 = vmatpush1.bf16.msra.mxu0 %v1170
      %1192 = vmatprep.subr.bf16.mxu0 0
      %1193 = vmatpush1.bf16.msra.mxu0 %v1171
      %1194 = vmatprep.subr.bf16.mxu0 0
      %1195 = vmatpush1.bf16.msra.mxu0 %v1172
      %1196 = vmatprep.subr.bf16.mxu0 0
      %1197 = vmatpush1.bf16.msra.mxu0 %v1173
      %1198 = vmatprep.subr.bf16.mxu0 0
      %1199 = vmatpush1.bf16.msra.mxu0 0
      %1200 = vmatprep.subr.bf16.mxu0 0
      %1201 = vmatpush1.bf16.msra.mxu0 0
      %1202 = vmatprep.subr.bf16.mxu0 0
      %1203 = vmatpush1.bf16.msra.mxu0 0
      %1204 = vmatprep.subr.bf16.mxu0 0
      %1205 = vmatpush1.bf16.msra.mxu0 0
      %1206 = vmatprep.subr.bf16.mxu0 0
      %1207 = vmatpush1.bf16.msra.mxu0 0
      %1208 = vmatprep.subr.bf16.mxu0 0
      %1209 = vmatpush1.bf16.msra.mxu0 0
      %1210 = vmatprep.subr.bf16.mxu0 0
      %1211 = vmatpush1.bf16.msra.mxu0 0
      %1212 = vmatprep.subr.bf16.mxu0 0
      %1213 = vmatpush1.bf16.msra.mxu0 0
      %1214 = vmatprep.mubr.bf16.mxu0 0
      %1215 = vmatmul.mubr.bf16.gmra.mrb[0].mxu0 %v980
      %v1216 = vpop.f32.mrb[0].mxu0
      %v1217 = vadd.f32 %v1128, %v1216
      %v1218 = vpop.f32.mrb[0].mxu0
      %v1219 = vpop.f32.mrb[0].mxu0
      %v1220 = vadd.f32 %v1131, %v1219
      %v1221 = vpop.f32.mrb[0].mxu0
      %1222 = vdwg.mxu0
      %v1239 = vunpack.c.l.b16 %v1015
      %v1240 = vunpack.c.l.b16 %v1016
      %v1241 = vunpack.c.l.b16 %v1017
      %v1242 = vunpack.c.l.b16 %v1018
      %v1243 = vunpack.c.l.b16 %v1019
      %v1244 = vunpack.c.l.b16 %v1020
      %v1245 = vunpack.c.l.b16 %v1021
      %v1246 = vunpack.c.l.b16 %v1022
      %v1247 = vunpack.c.l.b16 %v1023
      %v1248 = vunpack.c.l.b16 %v1024
      %v1249 = vunpack.c.l.b16 %v1025
      %v1250 = vunpack.c.l.b16 %v1026
      %v1251 = vunpack.c.l.b16 %v1027
      %v1252 = vunpack.c.l.b16 %v1028
      %v1253 = vunpack.c.l.b16 %v1029
      %v1254 = vunpack.c.l.b16 %v1030
      %v1255 = vpack.c.b16 %v1240, %v1239
      %v1256 = vpack.c.b16 %v1242, %v1241
      %v1257 = vpack.c.b16 %v1244, %v1243
      %v1258 = vpack.c.b16 %v1246, %v1245
      %v1259 = vpack.c.b16 %v1248, %v1247
      %v1260 = vpack.c.b16 %v1250, %v1249
      %v1261 = vpack.c.b16 %v1252, %v1251
      %v1262 = vpack.c.b16 %v1254, %v1253
      %1271 = vmatprep.subr.bf16.mxu0 0
      %1272 = vmatpush1.bf16.msra.mxu0 %v1255
      %1273 = vmatprep.subr.bf16.mxu0 0
      %1274 = vmatpush1.bf16.msra.mxu0 %v1256
      %1275 = vmatprep.subr.bf16.mxu0 0
      %1276 = vmatpush1.bf16.msra.mxu0 %v1257
      %1277 = vmatprep.subr.bf16.mxu0 0
      %1278 = vmatpush1.bf16.msra.mxu0 %v1258
      %1279 = vmatprep.subr.bf16.mxu0 0
      %1280 = vmatpush1.bf16.msra.mxu0 %v1259
      %1281 = vmatprep.subr.bf16.mxu0 0
      %1282 = vmatpush1.bf16.msra.mxu0 %v1260
      %1283 = vmatprep.subr.bf16.mxu0 0
      %1284 = vmatpush1.bf16.msra.mxu0 %v1261
      %1285 = vmatprep.subr.bf16.mxu0 0
      %1286 = vmatpush1.bf16.msra.mxu0 %v1262
      %1287 = vmatprep.subr.bf16.mxu0 0
      %1288 = vmatpush1.bf16.msra.mxu0 0
      %1289 = vmatprep.subr.bf16.mxu0 0
      %1290 = vmatpush1.bf16.msra.mxu0 0
      %1291 = vmatprep.subr.bf16.mxu0 0
      %1292 = vmatpush1.bf16.msra.mxu0 0
      %1293 = vmatprep.subr.bf16.mxu0 0
      %1294 = vmatpush1.bf16.msra.mxu0 0
      %1295 = vmatprep.subr.bf16.mxu0 0
      %1296 = vmatpush1.bf16.msra.mxu0 0
      %1297 = vmatprep.subr.bf16.mxu0 0
      %1298 = vmatpush1.bf16.msra.mxu0 0
      %1299 = vmatprep.subr.bf16.mxu0 0
      %1300 = vmatpush1.bf16.msra.mxu0 0
      %1301 = vmatprep.subr.bf16.mxu0 0
      %1302 = vmatpush1.bf16.msra.mxu0 0
      %1303 = vmatprep.mubr.bf16.mxu0 0
      %1304 = vmatmul.mubr.bf16.gmra.mrb[0].mxu0 %v1044
      %v1305 = vpop.f32.mrb[0].mxu0
      %v1306 = vadd.f32 0.0, %v1305
      %v1307 = vpop.f32.mrb[0].mxu0
      %v1308 = vpop.f32.mrb[0].mxu0
      %v1309 = vadd.f32 0.0, %v1308
      %v1310 = vpop.f32.mrb[0].mxu0
      %1311 = vdwg.mxu0
      %v1312 = vadd.f32 %v1217, %v1306
      %v1313 = vadd.f32 %v1220, %v1309
      %v1314 = vadd.f32 %v1312, %v1313
      %v1315 = vrot.slane %v1314, 4
      %v1316 = vadd.f32 %v1314, %v1315
      %v1317 = vrot.slane %v1316, 2
      %v1318 = vadd.f32 %v1316, %v1317
      %v1319 = vrot.slane %v1318, 1
      %v1320 = vadd.f32 %v1318, %v1319
      %v1321 = vmul.f32 %v1312, %v1312
      %v1322 = vmul.f32 %v1313, %v1313
      %v1323 = vadd.f32 %v1321, %v1322
      %v1324 = vrot.slane %v1323, 4
      %v1325 = vadd.f32 %v1323, %v1324
      %v1326 = vrot.slane %v1325, 2
      %v1327 = vadd.f32 %v1325, %v1326
      %v1328 = vrot.slane %v1327, 1
      %v1329 = vadd.f32 %v1327, %v1328
      %v1330 = vsel %vm802, %v1320, %v1329
      %1331 = vmatprep.subr.mxu0 0.0
      %1332 = vmatpush1.msra.mxu0 %v446
      %1333 = vmatprep.subr.mxu0 0.0
      %1334 = vmatpush1.msra.mxu0 %v447
      %1335 = vmatprep.subr.mxu0 0.0
      %1336 = vmatpush1.msra.mxu0 %v448
      %1337 = vmatprep.subr.mxu0 0.0
      %1338 = vmatpush1.msra.mxu0 %v449
      %1339 = vmatprep.subr.mxu0 0.0
      %1340 = vmatpush1.msra.mxu0 %v450
      %1341 = vmatprep.subr.mxu0 0.0
      %1342 = vmatpush1.msra.mxu0 %v451
      %1343 = vmatprep.subr.mxu0 0.0
      %1344 = vmatpush1.msra.mxu0 %v452
      %1345 = vmatprep.subr.mxu0 0.0
      %1346 = vmatpush1.msra.mxu0 %v453
      %1347 = vmatprep.subr.mxu0 0.0
      %1348 = vmatpush1.msra.mxu0 %v454
      %1349 = vmatprep.subr.mxu0 0.0
      %1350 = vmatpush1.msra.mxu0 %v455
      %1351 = vmatprep.subr.mxu0 0.0
      %1352 = vmatpush1.msra.mxu0 %v456
      %1353 = vmatprep.subr.mxu0 0.0
      %1354 = vmatpush1.msra.mxu0 %v457
      %1355 = vmatprep.subr.mxu0 0.0
      %1356 = vmatpush1.msra.mxu0 %v458
      %1357 = vmatprep.subr.mxu0 0.0
      %1358 = vmatpush1.msra.mxu0 %v459
      %1359 = vmatprep.subr.mxu0 0.0
      %1360 = vmatpush1.msra.mxu0 %v460
      %1361 = vmatprep.subr.mxu0 0.0
      %1362 = vmatpush1.msra.mxu0 %v461
      %1363 = vmatprep.subr.mxu0 0.0
      %1364 = vmatpush1.msra.mxu0 0.0
      %1365 = vmatprep.subr.mxu0 0.0
      %1366 = vmatpush1.msra.mxu0 0.0
      %1367 = vmatprep.subr.mxu0 0.0
      %1368 = vmatpush1.msra.mxu0 0.0
      %1369 = vmatprep.subr.mxu0 0.0
      %1370 = vmatpush1.msra.mxu0 0.0
      %1371 = vmatprep.subr.mxu0 0.0
      %1372 = vmatpush1.msra.mxu0 0.0
      %1373 = vmatprep.subr.mxu0 0.0
      %1374 = vmatpush1.msra.mxu0 0.0
      %1375 = vmatprep.subr.mxu0 0.0
      %1376 = vmatpush1.msra.mxu0 0.0
      %1377 = vmatprep.subr.mxu0 0.0
      %1378 = vmatpush1.msra.mxu0 0.0
      %1379 = vmatprep.subr.mxu0 0.0
      %1380 = vmatpush1.msra.mxu0 0.0
      %1381 = vmatprep.subr.mxu0 0.0
      %1382 = vmatpush1.msra.mxu0 0.0
      %1383 = vmatprep.subr.mxu0 0.0
      %1384 = vmatpush1.msra.mxu0 0.0
      %1385 = vmatprep.subr.mxu0 0.0
      %1386 = vmatpush1.msra.mxu0 0.0
      %1387 = vmatprep.subr.mxu0 0.0
      %1388 = vmatpush1.msra.mxu0 0.0
      %1389 = vmatprep.subr.mxu0 0.0
      %1390 = vmatpush1.msra.mxu0 0.0
      %1391 = vmatprep.subr.mxu0 0.0
      %1392 = vmatpush1.msra.mxu0 0.0
      %1393 = vmatprep.subr.mxu0 0.0
      %1394 = vmatpush1.msra.mxu0 0.0
      %1395 = vmatprep.mubr.f32.mxu0 0.0
      %1396 = vmatmul.mubr.f32.gmra.mrb[0].mxu0 %v1330
      %v1397 = vpop.f32.mrb[0].mxu0
      %v1398 = vadd.f32 0.0, %v1397
      %v1399 = vpop.f32.mrb[0].mxu0
      %1400 = vdwg.mxu0
      %v1401 = vmul.f32 %v1398, 0.00390625
      %v1402 = vmul.f32 %v1401, %v1401
      %v1404 = vrot.slane %v1402, 7
      %v1406 = vsub.f32 %v1401, %v1404
      %v1407 = vmax.f32 %v1406, 0.0
      %v1408 = vadd.f32 %v1407, 1e-05
      %v1409 = vrsqrt.pop %v1408
      %v1410 = vsub.f32 0.0, %v1401
      %v1412 = vrot.slane %v1409, 1
      %v1414 = vmul.f32 %v1410, %v1412
      %v1416 = vrot.slane %v1414, 7
      %v1418 = vsel %vm802, %v1412, %v1416
      %v1420 = vsel %vm892, %v1418, 0
      %1422 = vmatprep.subr.mxu0 0.0
      %1423 = vmatpush1.msra.mxu0 %v476
      %1424 = vmatprep.subr.mxu0 0.0
      %1425 = vmatpush1.msra.mxu0 0.0
      %1426 = vmatprep.subr.mxu0 0.0
      %1427 = vmatpush1.msra.mxu0 0.0
      %1428 = vmatprep.subr.mxu0 0.0
      %1429 = vmatpush1.msra.mxu0 0.0
      %1430 = vmatprep.subr.mxu0 0.0
      %1431 = vmatpush1.msra.mxu0 0.0
      %1432 = vmatprep.subr.mxu0 0.0
      %1433 = vmatpush1.msra.mxu0 0.0
      %1434 = vmatprep.subr.mxu0 0.0
      %1435 = vmatpush1.msra.mxu0 0.0
      %1436 = vmatprep.subr.mxu0 0.0
      %1437 = vmatpush1.msra.mxu0 0.0
      %1438 = vmatprep.subr.mxu0 0.0
      %1439 = vmatpush1.msra.mxu0 0.0
      %1440 = vmatprep.subr.mxu0 0.0
      %1441 = vmatpush1.msra.mxu0 0.0
      %1442 = vmatprep.subr.mxu0 0.0
      %1443 = vmatpush1.msra.mxu0 0.0
      %1444 = vmatprep.subr.mxu0 0.0
      %1445 = vmatpush1.msra.mxu0 0.0
      %1446 = vmatprep.subr.mxu0 0.0
      %1447 = vmatpush1.msra.mxu0 0.0
      %1448 = vmatprep.subr.mxu0 0.0
      %1449 = vmatpush1.msra.mxu0 0.0
      %1450 = vmatprep.subr.mxu0 0.0
      %1451 = vmatpush1.msra.mxu0 0.0
      %1452 = vmatprep.subr.mxu0 0.0
      %1453 = vmatpush1.msra.mxu0 0.0
      %1454 = vmatprep.subr.mxu0 0.0
      %1455 = vmatpush1.msra.mxu0 0.0
      %1456 = vmatprep.subr.mxu0 0.0
      %1457 = vmatpush1.msra.mxu0 0.0
      %1458 = vmatprep.subr.mxu0 0.0
      %1459 = vmatpush1.msra.mxu0 0.0
      %1460 = vmatprep.subr.mxu0 0.0
      %1461 = vmatpush1.msra.mxu0 0.0
      %1462 = vmatprep.subr.mxu0 0.0
      %1463 = vmatpush1.msra.mxu0 0.0
      %1464 = vmatprep.subr.mxu0 0.0
      %1465 = vmatpush1.msra.mxu0 0.0
      %1466 = vmatprep.subr.mxu0 0.0
      %1467 = vmatpush1.msra.mxu0 0.0
      %1468 = vmatprep.subr.mxu0 0.0
      %1469 = vmatpush1.msra.mxu0 0.0
      %1470 = vmatprep.subr.mxu0 0.0
      %1471 = vmatpush1.msra.mxu0 0.0
      %1472 = vmatprep.subr.mxu0 0.0
      %1473 = vmatpush1.msra.mxu0 0.0
      %1474 = vmatprep.subr.mxu0 0.0
      %1475 = vmatpush1.msra.mxu0 0.0
      %1476 = vmatprep.subr.mxu0 0.0
      %1477 = vmatpush1.msra.mxu0 0.0
      %1478 = vmatprep.subr.mxu0 0.0
      %1479 = vmatpush1.msra.mxu0 0.0
      %1480 = vmatprep.subr.mxu0 0.0
      %1481 = vmatpush1.msra.mxu0 0.0
      %1482 = vmatprep.subr.mxu0 0.0
      %1483 = vmatpush1.msra.mxu0 0.0
      %1484 = vmatprep.subr.mxu0 0.0
      %1485 = vmatpush1.msra.mxu0 0.0
      %1486 = vmatprep.mubr.f32.mxu0 0.0
      %1487 = vmatmul.mubr.f32.gmra.mrb[0].mxu0 %v1420
      %v1488 = vpop.f32.mrb[0].mxu0
      %v1489 = vadd.f32 0.0, %v1488
      %v1490 = vpop.f32.mrb[0].mxu0
      %1491 = vdwg.mxu0
      %v1492 = vlaneseq
      %v1493 = vshrl.u32 %v1492, 7
      %v1494 = vsub.s32 0, %v1493
      %v1495 = vrot.slane %v1489, %v1494
      %v1496 = vmul.f32 %v1312, %v1495
      %v1497 = vmul.f32 %v1313, %v1495
      %v1498 = vlaneseq
      %v1499 = vshrl.u32 %v1498, 7
      %v1500 = vsub.s32 1, %v1499
      %v1501 = vrot.slane %v1489, %v1500
      %v1502 = vadd.f32 %v1496, %v1501
      %v1503 = vadd.f32 %v1497, %v1501
      %v1504 = vadd.f32 %v599, %v603
      %v1505 = vrot.slane %v1504, 4
      %v1506 = vadd.f32 %v1504, %v1505
      %v1507 = vrot.slane %v1506, 2
      %v1508 = vadd.f32 %v1506, %v1507
      %v1509 = vrot.slane %v1508, 1
      %v1510 = vadd.f32 %v1508, %v1509
      %v1511 = vmul.f32 %v599, %v599
      %v1512 = vmul.f32 %v603, %v603
      %v1513 = vadd.f32 %v1511, %v1512
      %v1514 = vrot.slane %v1513, 4
      %v1515 = vadd.f32 %v1513, %v1514
      %v1516 = vrot.slane %v1515, 2
      %v1517 = vadd.f32 %v1515, %v1516
      %v1518 = vrot.slane %v1517, 1
      %v1519 = vadd.f32 %v1517, %v1518
      %v1520 = vsel %vm802, %v1510, %v1519
      %1521 = vmatprep.subr.mxu0 0.0
      %1522 = vmatpush1.msra.mxu0 %v446
      %1523 = vmatprep.subr.mxu0 0.0
      %1524 = vmatpush1.msra.mxu0 %v447
      %1525 = vmatprep.subr.mxu0 0.0
      %1526 = vmatpush1.msra.mxu0 %v448
      %1527 = vmatprep.subr.mxu0 0.0
      %1528 = vmatpush1.msra.mxu0 %v449
      %1529 = vmatprep.subr.mxu0 0.0
      %1530 = vmatpush1.msra.mxu0 %v450
      %1531 = vmatprep.subr.mxu0 0.0
      %1532 = vmatpush1.msra.mxu0 %v451
      %1533 = vmatprep.subr.mxu0 0.0
      %1534 = vmatpush1.msra.mxu0 %v452
      %1535 = vmatprep.subr.mxu0 0.0
      %1536 = vmatpush1.msra.mxu0 %v453
      %1537 = vmatprep.subr.mxu0 0.0
      %1538 = vmatpush1.msra.mxu0 %v454
      %1539 = vmatprep.subr.mxu0 0.0
      %1540 = vmatpush1.msra.mxu0 %v455
      %1541 = vmatprep.subr.mxu0 0.0
      %1542 = vmatpush1.msra.mxu0 %v456
      %1543 = vmatprep.subr.mxu0 0.0
      %1544 = vmatpush1.msra.mxu0 %v457
      %1545 = vmatprep.subr.mxu0 0.0
      %1546 = vmatpush1.msra.mxu0 %v458
      %1547 = vmatprep.subr.mxu0 0.0
      %1548 = vmatpush1.msra.mxu0 %v459
      %1549 = vmatprep.subr.mxu0 0.0
      %1550 = vmatpush1.msra.mxu0 %v460
      %1551 = vmatprep.subr.mxu0 0.0
      %1552 = vmatpush1.msra.mxu0 %v461
      %1553 = vmatprep.subr.mxu0 0.0
      %1554 = vmatpush1.msra.mxu0 0.0
      %1555 = vmatprep.subr.mxu0 0.0
      %1556 = vmatpush1.msra.mxu0 0.0
      %1557 = vmatprep.subr.mxu0 0.0
      %1558 = vmatpush1.msra.mxu0 0.0
      %1559 = vmatprep.subr.mxu0 0.0
      %1560 = vmatpush1.msra.mxu0 0.0
      %1561 = vmatprep.subr.mxu0 0.0
      %1562 = vmatpush1.msra.mxu0 0.0
      %1563 = vmatprep.subr.mxu0 0.0
      %1564 = vmatpush1.msra.mxu0 0.0
      %1565 = vmatprep.subr.mxu0 0.0
      %1566 = vmatpush1.msra.mxu0 0.0
      %1567 = vmatprep.subr.mxu0 0.0
      %1568 = vmatpush1.msra.mxu0 0.0
      %1569 = vmatprep.subr.mxu0 0.0
      %1570 = vmatpush1.msra.mxu0 0.0
      %1571 = vmatprep.subr.mxu0 0.0
      %1572 = vmatpush1.msra.mxu0 0.0
      %1573 = vmatprep.subr.mxu0 0.0
      %1574 = vmatpush1.msra.mxu0 0.0
      %1575 = vmatprep.subr.mxu0 0.0
      %1576 = vmatpush1.msra.mxu0 0.0
      %1577 = vmatprep.subr.mxu0 0.0
      %1578 = vmatpush1.msra.mxu0 0.0
      %1579 = vmatprep.subr.mxu0 0.0
      %1580 = vmatpush1.msra.mxu0 0.0
      %1581 = vmatprep.subr.mxu0 0.0
      %1582 = vmatpush1.msra.mxu0 0.0
      %1583 = vmatprep.subr.mxu0 0.0
      %1584 = vmatpush1.msra.mxu0 0.0
      %1585 = vmatprep.mubr.f32.mxu0 0.0
      %1586 = vmatmul.mubr.f32.gmra.mrb[0].mxu0 %v1520
      %v1587 = vpop.f32.mrb[0].mxu0
      %v1588 = vadd.f32 0.0, %v1587
      %v1589 = vpop.f32.mrb[0].mxu0
      %1590 = vdwg.mxu0
      %v1591 = vmul.f32 %v1588, 0.00390625
      %v1592 = vmul.f32 %v1591, %v1591
      %v1594 = vrot.slane %v1592, 7
      %v1596 = vsub.f32 %v1591, %v1594
      %v1597 = vmax.f32 %v1596, 0.0
      %v1598 = vadd.f32 %v1597, 1e-05
      %v1599 = vrsqrt.pop %v1598
      %v1600 = vsub.f32 0.0, %v1591
      %v1602 = vrot.slane %v1599, 1
      %v1604 = vmul.f32 %v1600, %v1602
      %v1606 = vrot.slane %v1604, 7
      %v1608 = vsel %vm802, %v1602, %v1606
      %v1610 = vsel %vm892, %v1608, 0
      %1612 = vmatprep.subr.mxu0 0.0
      %1613 = vmatpush1.msra.mxu0 %v476
      %1614 = vmatprep.subr.mxu0 0.0
      %1615 = vmatpush1.msra.mxu0 0.0
      %1616 = vmatprep.subr.mxu0 0.0
      %1617 = vmatpush1.msra.mxu0 0.0
      %1618 = vmatprep.subr.mxu0 0.0
      %1619 = vmatpush1.msra.mxu0 0.0
      %1620 = vmatprep.subr.mxu0 0.0
      %1621 = vmatpush1.msra.mxu0 0.0
      %1622 = vmatprep.subr.mxu0 0.0
      %1623 = vmatpush1.msra.mxu0 0.0
      %1624 = vmatprep.subr.mxu0 0.0
      %1625 = vmatpush1.msra.mxu0 0.0
      %1626 = vmatprep.subr.mxu0 0.0
      %1627 = vmatpush1.msra.mxu0 0.0
      %1628 = vmatprep.subr.mxu0 0.0
      %1629 = vmatpush1.msra.mxu0 0.0
      %1630 = vmatprep.subr.mxu0 0.0
      %1631 = vmatpush1.msra.mxu0 0.0
      %1632 = vmatprep.subr.mxu0 0.0
      %1633 = vmatpush1.msra.mxu0 0.0
      %1634 = vmatprep.subr.mxu0 0.0
      %1635 = vmatpush1.msra.mxu0 0.0
      %1636 = vmatprep.subr.mxu0 0.0
      %1637 = vmatpush1.msra.mxu0 0.0
      %1638 = vmatprep.subr.mxu0 0.0
      %1639 = vmatpush1.msra.mxu0 0.0
      %1640 = vmatprep.subr.mxu0 0.0
      %1641 = vmatpush1.msra.mxu0 0.0
      %1642 = vmatprep.subr.mxu0 0.0
      %1643 = vmatpush1.msra.mxu0 0.0
      %1644 = vmatprep.subr.mxu0 0.0
      %1645 = vmatpush1.msra.mxu0 0.0
      %1646 = vmatprep.subr.mxu0 0.0
      %1647 = vmatpush1.msra.mxu0 0.0
      %1648 = vmatprep.subr.mxu0 0.0
      %1649 = vmatpush1.msra.mxu0 0.0
      %1650 = vmatprep.subr.mxu0 0.0
      %1651 = vmatpush1.msra.mxu0 0.0
      %1652 = vmatprep.subr.mxu0 0.0
      %1653 = vmatpush1.msra.mxu0 0.0
      %1654 = vmatprep.subr.mxu0 0.0
      %1655 = vmatpush1.msra.mxu0 0.0
      %1656 = vmatprep.subr.mxu0 0.0
      %1657 = vmatpush1.msra.mxu0 0.0
      %1658 = vmatprep.subr.mxu0 0.0
      %1659 = vmatpush1.msra.mxu0 0.0
      %1660 = vmatprep.subr.mxu0 0.0
      %1661 = vmatpush1.msra.mxu0 0.0
      %1662 = vmatprep.subr.mxu0 0.0
      %1663 = vmatpush1.msra.mxu0 0.0
      %1664 = vmatprep.subr.mxu0 0.0
      %1665 = vmatpush1.msra.mxu0 0.0
      %1666 = vmatprep.subr.mxu0 0.0
      %1667 = vmatpush1.msra.mxu0 0.0
      %1668 = vmatprep.subr.mxu0 0.0
      %1669 = vmatpush1.msra.mxu0 0.0
      %1670 = vmatprep.subr.mxu0 0.0
      %1671 = vmatpush1.msra.mxu0 0.0
      %1672 = vmatprep.subr.mxu0 0.0
      %1673 = vmatpush1.msra.mxu0 0.0
      %1674 = vmatprep.subr.mxu0 0.0
      %1675 = vmatpush1.msra.mxu0 0.0
      %1676 = vmatprep.mubr.f32.mxu0 0.0
      %1677 = vmatmul.mubr.f32.gmra.mrb[0].mxu0 %v1610
      %v1678 = vpop.f32.mrb[0].mxu0
      %v1679 = vadd.f32 0.0, %v1678
      %v1680 = vpop.f32.mrb[0].mxu0
      %1681 = vdwg.mxu0
      %v1682 = vlaneseq
      %v1683 = vshrl.u32 %v1682, 7
      %v1684 = vsub.s32 0, %v1683
      %v1685 = vrot.slane %v1679, %v1684
      %v1686 = vmul.f32 %v599, %v1685
      %v1687 = vmul.f32 %v603, %v1685
      %v1688 = vlaneseq
      %v1689 = vshrl.u32 %v1688, 7
      %v1690 = vsub.s32 1, %v1689
      %v1691 = vrot.slane %v1679, %v1690
      %v1692 = vadd.f32 %v1686, %v1691
      %v1693 = vadd.f32 %v1687, %v1691
      %v1694 = vadd.f32 %v1502, %v1692
      %v1695 = vadd.f32 %v1503, %v1693
      %v1696 = vmax.f32 %v1694, 0.0
      %v1697 = vmax.f32 %v1695, 0.0
      %1698 = vst [vmem:[%s197] sm:$0xff] %v1696
      %1699 = vst [vmem:[%s197 + $0x8] sm:$0xff] %v1697
      %p1700 = scmp.lt.s32.totalorder %s15, 1
      %s1701 = scalar_select %p1700, %s15, 1
      %s1702 = smul.addr %s1701, 2
      %s1703 = smul.addr %s1702, 8
      %s1704 = scalar_lea.vmem %s4, %s1703
      // Predicated region
      $region37: #{residual_block_forward.1} parent=35 // pred_check
        %p1705 = pneg %p122
      $region38: #{residual_block_forward.1} parent=35 // pred_check_branch
        %1707 = sbr.rel (%p1705) target = $region40
      $region39: #{residual_block_forward.1} parent=35 // pred_region
        _
      $region40: #{residual_block_forward.1} parent=35 // pred_fallthru
        _
    $region36: #{residual_block_forward.1} parent=5 // pred_fallthru
      _
    %p1708 = scmp.le.s32.totalorder 2, %s10
    // Predicated region
    $region41: #{residual_block_forward.1} parent=5 // pred_check
      %p1709 = pneg %p1708
    $region42: #{residual_block_forward.1} parent=5 // pred_check_branch
      %1711 = sbr.rel (%p1709) target = $region44
    $region43: #{residual_block_forward.1} parent=5 // pred_region
      %s1712 = ssub.s32 %s10, 2
      // Predicated region
      $region45: #{residual_block_forward.1} parent=43 // pred_check
        %p1713 = pneg %p128
      $region46: #{residual_block_forward.1} parent=43 // pred_check_branch
        %1715 = sbr.rel (%p1713) target = $region48
      $region47: #{residual_block_forward.1} parent=43 // pred_region
        %p1716 = scmp.lt.s32.totalorder %s16, 1
        %s1717 = scalar_select %p1716, %s16, 1
        %s1718 = smul.addr %s1717, 2
        %s1719 = smul.addr %s1718, 8
        %s1720 = scalar_lea.vmem %s4, %s1719
      $region48: #{residual_block_forward.1} parent=43 // pred_fallthru
        _
    $region44: #{residual_block_forward.1} parent=5 // pred_fallthru
      _
  $region6: #{residual_block_forward.1} parent=0 // loop_footer
    %s14 = sadd.s32 1, %s10
  $region7: #{residual_block_forward.1} parent=0 // loop_footer_branch
    %9 = sbr.rel target = $region3
  $region8: #{residual_block_forward.1} parent=0 // loop_exit
    _

</llo_original>
